<compile_context>
chip_gen: v6e
topology: v6e:2x2x1
jax: 0.10.0
libtpu: 0.0.40
codegen_flags: <defaults>
</compile_context>

<pallas_src>
import functools

import jax
import jax.numpy as jnp
from jax import lax
from jax.experimental import pallas as pl
from jax.experimental.pallas import tpu as pltpu

BN_EPS = 1e-5


# ---------------------------------------------------------------------------
# Pallas kernels
# ---------------------------------------------------------------------------
def _conv_stats_kernel(p_ref, w_ref, y_ref, s1_ref, s2_ref):
    """Pass 1: y = patches @ W (bf16 in, f32 acc); accumulate per-channel
    sum and sum-of-squares across the M grid axis (global BN statistics)."""
    y = jnp.dot(p_ref[...], w_ref[...], preferred_element_type=jnp.float32)
    y_ref[...] = y

    @pl.when(pl.program_id(0) == 0)
    def _():
        s1_ref[...] = jnp.zeros_like(s1_ref)
        s2_ref[...] = jnp.zeros_like(s2_ref)

    s1_ref[...] += jnp.sum(y, axis=0, keepdims=True)
    s2_ref[...] += jnp.sum(y * y, axis=0, keepdims=True)


def _bn_relu_kernel(y_ref, s1_ref, s2_ref, g_ref, b_ref, o_ref, *, inv_m):
    """Pass 2 (conv1): out = relu( BN(y) ) with global batch statistics."""
    mean = s1_ref[...] * inv_m
    var = s2_ref[...] * inv_m - mean * mean           # one-pass variance
    scale = g_ref[...] * lax.rsqrt(var + BN_EPS)      # rsqrt on EUP slot
    shift = b_ref[...] - mean * scale
    o_ref[...] = jnp.maximum(y_ref[...] * scale + shift, 0.0).astype(o_ref.dtype)


def _bn_add_relu_kernel(y_ref, s1_ref, s2_ref, g_ref, b_ref, res_ref, o_ref,
                        *, inv_m):
    """Pass 2 (conv2, identity shortcut): out = relu( BN(y) + x_res )."""
    mean = s1_ref[...] * inv_m
    var = s2_ref[...] * inv_m - mean * mean
    scale = g_ref[...] * lax.rsqrt(var + BN_EPS)
    shift = b_ref[...] - mean * scale
    out = y_ref[...] * scale + shift + res_ref[...].astype(jnp.float32)
    o_ref[...] = jnp.maximum(out, 0.0).astype(o_ref.dtype)


def _bn_proj_add_relu_kernel(y_ref, s1_ref, s2_ref, g_ref, b_ref,
                             xres_ref, wt_ref, bt_ref, o_ref, *, inv_m):
    """Pass 2 (conv2, channel change): out = relu( BN(y) + (x_res @ Wt + bt) )."""
    mean = s1_ref[...] * inv_m
    var = s2_ref[...] * inv_m - mean * mean
    scale = g_ref[...] * lax.rsqrt(var + BN_EPS)
    shift = b_ref[...] - mean * scale
    res = jnp.dot(xres_ref[...], wt_ref[...],
                  preferred_element_type=jnp.float32) + bt_ref[...]
    out = y_ref[...] * scale + shift + res
    o_ref[...] = jnp.maximum(out, 0.0).astype(o_ref.dtype)


# ---------------------------------------------------------------------------
# pallas_call wrappers
# ---------------------------------------------------------------------------
def _vec_spec(cp):
    # per-channel vector (1, Cp): block == full array, constant index.
    return pl.BlockSpec((1, cp), lambda i: (0, 0))


def _call_conv_stats(patches, w, tm):
    mp, kp = patches.shape
    cp = w.shape[1]
    return pl.pallas_call(
        _conv_stats_kernel,
        out_shape=(jax.ShapeDtypeStruct((mp, cp), jnp.float32),
                   jax.ShapeDtypeStruct((1, cp), jnp.float32),
                   jax.ShapeDtypeStruct((1, cp), jnp.float32)),
        grid=(mp // tm,),
        in_specs=[pl.BlockSpec((tm, kp), lambda i: (i, 0)),
                  pl.BlockSpec((kp, cp), lambda i: (0, 0))],
        out_specs=(pl.BlockSpec((tm, cp), lambda i: (i, 0)),
                   _vec_spec(cp), _vec_spec(cp)),
        compiler_params=pltpu.CompilerParams(
            dimension_semantics=("arbitrary",)),   # accumulator over M axis
    )(patches, w)


def _call_bn_relu(y, s1, s2, g, beta, m_valid, tm, out_dtype):
    mp, cp = y.shape
    kernel = functools.partial(_bn_relu_kernel, inv_m=1.0 / float(m_valid))
    return pl.pallas_call(
        kernel,
        out_shape=jax.ShapeDtypeStruct((mp, cp), out_dtype),
        grid=(mp // tm,),
        in_specs=[pl.BlockSpec((tm, cp), lambda i: (i, 0)),
                  _vec_spec(cp), _vec_spec(cp), _vec_spec(cp), _vec_spec(cp)],
        out_specs=pl.BlockSpec((tm, cp), lambda i: (i, 0)),
        compiler_params=pltpu.CompilerParams(
            dimension_semantics=("parallel",)),
    )(y, s1, s2, g, beta)


def _call_bn_add_relu(y, s1, s2, g, beta, res, m_valid, tm):
    mp, cp = y.shape
    kernel = functools.partial(_bn_add_relu_kernel, inv_m=1.0 / float(m_valid))
    return pl.pallas_call(
        kernel,
        out_shape=jax.ShapeDtypeStruct((mp, cp), jnp.float32),
        grid=(mp // tm,),
        in_specs=[pl.BlockSpec((tm, cp), lambda i: (i, 0)),
                  _vec_spec(cp), _vec_spec(cp), _vec_spec(cp), _vec_spec(cp),
                  pl.BlockSpec((tm, cp), lambda i: (i, 0))],
        out_specs=pl.BlockSpec((tm, cp), lambda i: (i, 0)),
        compiler_params=pltpu.CompilerParams(
            dimension_semantics=("parallel",)),
    )(y, s1, s2, g, beta, res)


def _call_bn_proj_add_relu(y, s1, s2, g, beta, xres, wt, bt, m_valid, tm):
    mp, cp = y.shape
    cin_p = xres.shape[1]
    kernel = functools.partial(_bn_proj_add_relu_kernel,
                               inv_m=1.0 / float(m_valid))
    return pl.pallas_call(
        kernel,
        out_shape=jax.ShapeDtypeStruct((mp, cp), jnp.float32),
        grid=(mp // tm,),
        in_specs=[pl.BlockSpec((tm, cp), lambda i: (i, 0)),
                  _vec_spec(cp), _vec_spec(cp), _vec_spec(cp), _vec_spec(cp),
                  pl.BlockSpec((tm, cin_p), lambda i: (i, 0)),
                  pl.BlockSpec((cin_p, cp), lambda i: (0, 0)),
                  _vec_spec(cp)],
        out_specs=pl.BlockSpec((tm, cp), lambda i: (i, 0)),
        compiler_params=pltpu.CompilerParams(
            dimension_semantics=("parallel",)),
    )(y, s1, s2, g, beta, xres, wt, bt)


# ---------------------------------------------------------------------------
# Plain-JAX glue (layout, padding, im2col, weight reshaping)
# ---------------------------------------------------------------------------
def _round_up(x, m):
    return (x + m - 1) // m * m


def _pad2d(a, rows, cols):
    r, c = a.shape
    return jnp.pad(a, ((0, rows - r), (0, cols - c)))


def _pad_vec(v, cols):
    return jnp.pad(v.astype(jnp.float32), (0, cols - v.shape[0])).reshape(1, cols)


def _choose_tm(m):
    # 512 rows: ~85% of HBM roofline per measured data, multiple of 256 for the
    # v6e/v7x 2x256 MXU, and small enough (bf16 patches + f32 out tile) to stay
    # well inside the v7x 32 MiB scoped-VMEM default with double buffering.
    return 512 if m >= 512 else _round_up(m, 8)


def _im2col_3x3(x_nhwc, stride):
    """x: (N, H, W, C), pad=1, kernel=3 -> (N*Ho*Wo, 9*C), Ho, Wo.

    Column order is (kh, kw, cin), matching weight transpose (2,3,1,0)."""
    N, H, W, C = x_nhwc.shape
    xp = jnp.pad(x_nhwc, ((0, 0), (1, 1), (1, 1), (0, 0)))
    Ho = (H + 2 - 3) // stride + 1
    Wo = (W + 2 - 3) // stride + 1
    cols = []
    for kh in range(3):
        for kw in range(3):
            cols.append(xp[:, kh:kh + stride * (Ho - 1) + 1:stride,
                           kw:kw + stride * (Wo - 1) + 1:stride, :])
    p = jnp.stack(cols, axis=3)                 # (N, Ho, Wo, 9, C)
    return p.reshape(N * Ho * Wo, 9 * C), Ho, Wo


def _conv3x3_weight_to_matrix(w):
    # PyTorch layout (Cout, Cin, 3, 3) -> (9*Cin, Cout), index order (kh,kw,cin)
    Cout, Cin = w.shape[0], w.shape[1]
    return jnp.transpose(w, (2, 3, 1, 0)).reshape(9 * Cin, Cout)


def init_basic_block_params(key, in_channels, out_channels):
    ks = jax.random.split(key, 8)
    # b1/b2 are kept for interface parity but are mathematically no-ops:
    # a per-channel bias before training-mode BatchNorm is cancelled by the
    # mean subtraction, so the kernels never read them.
    p = {
        "w1": 0.1 * jax.random.normal(ks[0], (out_channels, in_channels, 3, 3), jnp.float32),
        "b1": 0.1 * jax.random.normal(ks[1], (out_channels,), jnp.float32),
        "w2": 0.1 * jax.random.normal(ks[2], (out_channels, out_channels, 3, 3), jnp.float32),
        "b2": 0.1 * jax.random.normal(ks[3], (out_channels,), jnp.float32),
        "g1": 1.0 + 0.1 * jax.random.normal(ks[4], (out_channels,), jnp.float32),
        "be1": 0.1 * jax.random.normal(ks[5], (out_channels,), jnp.float32),
        "g2": 1.0 + 0.1 * jax.random.normal(ks[6], (out_channels,), jnp.float32),
        "be2": 0.1 * jax.random.normal(ks[7], (out_channels,), jnp.float32),
        "wt": 0.1 * jax.random.normal(jax.random.fold_in(key, 99),
                                      (out_channels, in_channels, 1, 1), jnp.float32),
        "bt": 0.1 * jax.random.normal(jax.random.fold_in(key, 100),
                                      (out_channels,), jnp.float32),
    }
    return p


@functools.partial(jax.jit, static_argnames=("stride",))
def basic_block_forward(x_nchw, params, stride=1):
    """Forward pass of BasicBlock.  x_nchw: (N, Cin, H, W) -> (N, Cout, Ho, Wo)."""
    N, Cin, H, W = x_nchw.shape
    Cout = params["w1"].shape[0]
    is_changed = Cin != Cout

    x = jnp.transpose(x_nchw, (0, 2, 3, 1)).astype(jnp.float32)   # NHWC

    Cp = _round_up(Cout, 128)                                     # lane-aligned Cout

    # ---- conv1 (pass 1: matmul + stats) + bn1 + relu (pass 2) ----
    p1, Ho, Wo = _im2col_3x3(x.astype(jnp.bfloat16), stride)      # bf16 patches
    M = N * Ho * Wo
    TM = _choose_tm(M)
    Mp = _round_up(M, TM)
    K1p = _round_up(p1.shape[1], 128)
    p1 = _pad2d(p1, Mp, K1p)
    w1m = _pad2d(_conv3x3_weight_to_matrix(params["w1"]).astype(jnp.bfloat16),
                 K1p, Cp)

    y1, s1_1, s2_1 = _call_conv_stats(p1, w1m, TM)
    f = _call_bn_relu(y1, s1_1, s2_1,
                      _pad_vec(params["g1"], Cp), _pad_vec(params["be1"], Cp),
                      M, TM, jnp.bfloat16)                        # (Mp, Cp) bf16
    f_nhwc = f[:M, :Cout].reshape(N, Ho, Wo, Cout)

    # ---- conv2 (pass 1) + bn2 + shortcut add + relu (pass 2) ----
    p2, _, _ = _im2col_3x3(f_nhwc, 1)                             # bf16 patches
    K2p = _round_up(p2.shape[1], 128)
    p2 = _pad2d(p2, Mp, K2p)
    w2m = _pad2d(_conv3x3_weight_to_matrix(params["w2"]).astype(jnp.bfloat16),
                 K2p, Cp)

    y2, s1_2, s2_2 = _call_conv_stats(p2, w2m, TM)

    g2 = _pad_vec(params["g2"], Cp)
    be2 = _pad_vec(params["be2"], Cp)
    x_res = x[:, ::stride, ::stride, :].reshape(M, Cin)

    if is_changed:
        # 1x1 projection shortcut fused into the pass-2 kernel (bf16 matmul).
        Cin_p = _round_up(Cin, 128)
        xr = _pad2d(x_res.astype(jnp.bfloat16), Mp, Cin_p)
        wt = _pad2d(params["wt"][:, :, 0, 0].T.astype(jnp.bfloat16), Cin_p, Cp)
        bt = _pad_vec(params["bt"], Cp)
        out = _call_bn_proj_add_relu(y2, s1_2, s2_2, g2, be2, xr, wt, bt, M, TM)
    else:
        # identity shortcut: plain f32 add in-kernel (no eye-matmul).
        xr = _pad2d(x_res, Mp, Cp)
        out = _call_bn_add_relu(y2, s1_2, s2_2, g2, be2, xr, M, TM)

    out = out[:M, :Cout].reshape(N, Ho, Wo, Cout)
    return jnp.transpose(out, (0, 3, 1, 2))                       # back to NCHW


if __name__ == "__main__":
    key = jax.random.PRNGKey(0)
    k_x1, k_p1, k_x2, k_p2 = jax.random.split(key, 4)

    # Case 1: channel change (1x1 projection shortcut path).
    N, Cin, H, W, Cout = 2, 4, 16, 16, 8
    x1 = jax.random.normal(k_x1, (N, Cin, H, W), jnp.float32)
    params1 = init_basic_block_params(k_p1, Cin, Cout)
    y1 = jax.block_until_ready(basic_block_forward(x1, params1, stride=1))
    assert y1.shape == (N, Cout, H, W), y1.shape
    assert bool(jnp.all(jnp.isfinite(y1))) and bool(jnp.all(y1 >= 0.0))

    # Case 2: identity shortcut (Cin == Cout) path.
    x2 = jax.random.normal(k_x2, (N, Cout, H, W), jnp.float32)
    params2 = init_basic_block_params(k_p2, Cout, Cout)
    y2 = jax.block_until_ready(basic_block_forward(x2, params2, stride=1))
    assert y2.shape == (N, Cout, H, W), y2.shape
    assert bool(jnp.all(jnp.isfinite(y2))) and bool(jnp.all(y2 >= 0.0))

    print("KERNEL_OK")
</pallas_src>

<mosaic_0001>
module attributes {stable_mosaic.version = 11 : i64} {
  func.func @_conv_stats_kernel(%arg0: i32, %arg1: memref<512x128xbf16, #tpu.memory_space<vmem>>, %arg2: memref<128x128xbf16, #tpu.memory_space<vmem>>, %arg3: memref<512x128xf32, #tpu.memory_space<vmem>>, %arg4: memref<1x128xf32, #tpu.memory_space<vmem>>, %arg5: memref<1x128xf32, #tpu.memory_space<vmem>>) attributes {dimension_semantics = [#tpu.dimension_semantics<arbitrary>], iteration_bounds = array<i64: 1>, scalar_prefetch = 0 : i64, scratch_operands = 0 : i64, tpu.core_type = #tpu.core_type<tc>, window_params = [{transform_indices = @transform_0, window_bounds = array<i64: 512, 128>}, {pipeline_mode = #tpu.pipeline_mode<synchronous>, transform_indices = @transform_1, window_bounds = array<i64: 128, 128>}, {transform_indices = @transform_2, window_bounds = array<i64: 512, 128>}, {pipeline_mode = #tpu.pipeline_mode<synchronous>, transform_indices = @transform_3, window_bounds = array<i64: 1, 128>}, {pipeline_mode = #tpu.pipeline_mode<synchronous>, transform_indices = @transform_4, window_bounds = array<i64: 1, 128>}]} {
    %c0 = arith.constant 0 : index
    %c0_0 = arith.constant 0 : index
    %0 = vector.load %arg1[%c0, %c0_0] : memref<512x128xbf16, #tpu.memory_space<vmem>>, vector<512x128xbf16>
    %c0_1 = arith.constant 0 : index
    %c0_2 = arith.constant 0 : index
    %1 = vector.load %arg2[%c0_1, %c0_2] : memref<128x128xbf16, #tpu.memory_space<vmem>>, vector<128x128xbf16>
    %cst = arith.constant dense<0.000000e+00> : vector<512x128xf32>
    %2 = tpu.matmul %0, %1, %cst {dimension_numbers = #tpu.dot_dimension_numbers<[1], [0], [0], [1], [0, 0, 1, 1], [], []>} : vector<512x128xbf16>, vector<128x128xbf16>, vector<512x128xf32> -> vector<512x128xf32>
    %c0_3 = arith.constant 0 : index
    %c0_4 = arith.constant 0 : index
    %3 = vector.load %arg3[%c0_3, %c0_4] : memref<512x128xf32, #tpu.memory_space<vmem>>, vector<512x128xf32>
    tpu.vector_store %arg3[%c0_3, %c0_4], %2 {strides = array<i32>} : memref<512x128xf32, #tpu.memory_space<vmem>>, vector<512x128xf32>,
    %c0_i32 = arith.constant 0 : i32
    %4 = arith.cmpi eq, %arg0, %c0_i32 : i32
    %5 = arith.extui %4 : i1 to i32
    %c0_i32_5 = arith.constant 0 : i32
    %6 = arith.cmpi ne, %5, %c0_i32_5 : i32
    scf.if %6 {
      %cst_16 = arith.constant 0.000000e+00 : f32
      %18 = vector.broadcast %cst_16 : f32 to vector<1x128xf32>
      %c0_17 = arith.constant 0 : index
      %c0_18 = arith.constant 0 : index
      %19 = vector.load %arg4[%c0_17, %c0_18] : memref<1x128xf32, #tpu.memory_space<vmem>>, vector<1x128xf32>
      tpu.vector_store %arg4[%c0_17, %c0_18], %18 {strides = array<i32>} : memref<1x128xf32, #tpu.memory_space<vmem>>, vector<1x128xf32>,
      %cst_19 = arith.constant 0.000000e+00 : f32
      %20 = vector.broadcast %cst_19 : f32 to vector<1x128xf32>
      %c0_20 = arith.constant 0 : index
      %c0_21 = arith.constant 0 : index
      %21 = vector.load %arg5[%c0_20, %c0_21] : memref<1x128xf32, #tpu.memory_space<vmem>>, vector<1x128xf32>
      tpu.vector_store %arg5[%c0_20, %c0_21], %20 {strides = array<i32>} : memref<1x128xf32, #tpu.memory_space<vmem>>, vector<1x128xf32>,
    } else {
    }
    %c0_6 = arith.constant 0 : index
    %c0_7 = arith.constant 0 : index
    %7 = vector.load %arg4[%c0_6, %c0_7] : memref<1x128xf32, #tpu.memory_space<vmem>>, vector<1x128xf32>
    %cst_8 = arith.constant dense<0.000000e+00> : vector<128xf32>
    %8 = vector.multi_reduction <add>, %2, %cst_8 [0] : vector<512x128xf32> to vector<128xf32>
    %9 = vector.shape_cast %8 : vector<128xf32> to vector<1x128xf32>
    %10 = arith.addf %7, %9 : vector<1x128xf32>
    %c0_9 = arith.constant 0 : index
    %c0_10 = arith.constant 0 : index
    %11 = vector.load %arg4[%c0_9, %c0_10] : memref<1x128xf32, #tpu.memory_space<vmem>>, vector<1x128xf32>
    tpu.vector_store %arg4[%c0_9, %c0_10], %10 {strides = array<i32>} : memref<1x128xf32, #tpu.memory_space<vmem>>, vector<1x128xf32>,
    %c0_11 = arith.constant 0 : index
    %c0_12 = arith.constant 0 : index
    %12 = vector.load %arg5[%c0_11, %c0_12] : memref<1x128xf32, #tpu.memory_space<vmem>>, vector<1x128xf32>
    %13 = arith.mulf %2, %2 : vector<512x128xf32>
    %cst_13 = arith.constant dense<0.000000e+00> : vector<128xf32>
    %14 = vector.multi_reduction <add>, %13, %cst_13 [0] : vector<512x128xf32> to vector<128xf32>
    %15 = vector.shape_cast %14 : vector<128xf32> to vector<1x128xf32>
    %16 = arith.addf %12, %15 : vector<1x128xf32>
    %c0_14 = arith.constant 0 : index
    %c0_15 = arith.constant 0 : index
    %17 = vector.load %arg5[%c0_14, %c0_15] : memref<1x128xf32, #tpu.memory_space<vmem>>, vector<1x128xf32>
    tpu.vector_store %arg5[%c0_14, %c0_15], %16 {strides = array<i32>} : memref<1x128xf32, #tpu.memory_space<vmem>>, vector<1x128xf32>,
    return
  }
  func.func @transform_0(%arg0: i32) -> (i32, i32) {
    %c0_i32 = arith.constant 0 : i32
    %c0_i32_0 = arith.constant 0 : i32
    return %arg0, %c0_i32 : i32, i32
  }
  func.func @transform_1(%arg0: i32) -> (i32, i32) {
    %c0_i32 = arith.constant 0 : i32
    %c0_i32_0 = arith.constant 0 : i32
    %c0_i32_1 = arith.constant 0 : i32
    return %c0_i32, %c0_i32_0 : i32, i32
  }
  func.func @transform_2(%arg0: i32) -> (i32, i32) {
    %c0_i32 = arith.constant 0 : i32
    %c0_i32_0 = arith.constant 0 : i32
    return %arg0, %c0_i32 : i32, i32
  }
  func.func @transform_3(%arg0: i32) -> (i32, i32) {
    %c0_i32 = arith.constant 0 : i32
    %c0_i32_0 = arith.constant 0 : i32
    %c0_i32_1 = arith.constant 0 : i32
    return %c0_i32, %c0_i32_0 : i32, i32
  }
  func.func @transform_4(%arg0: i32) -> (i32, i32) {
    %c0_i32 = arith.constant 0 : i32
    %c0_i32_0 = arith.constant 0 : i32
    %c0_i32_1 = arith.constant 0 : i32
    return %c0_i32, %c0_i32_0 : i32, i32
  }
}

module attributes {stable_mosaic.version = 11 : i64} {
  func.func @_bn_relu_kernel(%arg0: i32, %arg1: memref<512x128xf32, #tpu.memory_space<vmem>>, %arg2: memref<1x128xf32, #tpu.memory_space<vmem>>, %arg3: memref<1x128xf32, #tpu.memory_space<vmem>>, %arg4: memref<1x128xf32, #tpu.memory_space<vmem>>, %arg5: memref<1x128xf32, #tpu.memory_space<vmem>>, %arg6: memref<512x128xbf16, #tpu.memory_space<vmem>>) attributes {dimension_semantics = [#tpu.dimension_semantics<parallel>], iteration_bounds = array<i64: 1>, scalar_prefetch = 0 : i64, scratch_operands = 0 : i64, tpu.core_type = #tpu.core_type<tc>, window_params = [{transform_indices = @transform_0, window_bounds = array<i64: 512, 128>}, {pipeline_mode = #tpu.pipeline_mode<synchronous>, transform_indices = @transform_1, window_bounds = array<i64: 1, 128>}, {pipeline_mode = #tpu.pipeline_mode<synchronous>, transform_indices = @transform_2, window_bounds = array<i64: 1, 128>}, {pipeline_mode = #tpu.pipeline_mode<synchronous>, transform_indices = @transform_3, window_bounds = array<i64: 1, 128>}, {pipeline_mode = #tpu.pipeline_mode<synchronous>, transform_indices = @transform_4, window_bounds = array<i64: 1, 128>}, {transform_indices = @transform_5, window_bounds = array<i64: 512, 128>}]} {
    %c0 = arith.constant 0 : index
    %c0_0 = arith.constant 0 : index
    %0 = vector.load %arg2[%c0, %c0_0] : memref<1x128xf32, #tpu.memory_space<vmem>>, vector<1x128xf32>
    %cst = arith.constant 0.001953125 : f32
    %1 = vector.broadcast %cst : f32 to vector<1x128xf32>
    %2 = arith.mulf %0, %1 : vector<1x128xf32>
    %c0_1 = arith.constant 0 : index
    %c0_2 = arith.constant 0 : index
    %3 = vector.load %arg3[%c0_1, %c0_2] : memref<1x128xf32, #tpu.memory_space<vmem>>, vector<1x128xf32>
    %cst_3 = arith.constant 0.001953125 : f32
    %4 = vector.broadcast %cst_3 : f32 to vector<1x128xf32>
    %5 = arith.mulf %3, %4 : vector<1x128xf32>
    %6 = arith.mulf %2, %2 : vector<1x128xf32>
    %7 = arith.subf %5, %6 : vector<1x128xf32>
    %c0_4 = arith.constant 0 : index
    %c0_5 = arith.constant 0 : index
    %8 = vector.load %arg4[%c0_4, %c0_5] : memref<1x128xf32, #tpu.memory_space<vmem>>, vector<1x128xf32>
    %cst_6 = arith.constant 9.99999974E-6 : f32
    %9 = vector.broadcast %cst_6 : f32 to vector<1x128xf32>
    %10 = arith.addf %7, %9 : vector<1x128xf32>
    %11 = math.rsqrt %10 : vector<1x128xf32>
    %12 = arith.mulf %8, %11 : vector<1x128xf32>
    %c0_7 = arith.constant 0 : index
    %c0_8 = arith.constant 0 : index
    %13 = vector.load %arg5[%c0_7, %c0_8] : memref<1x128xf32, #tpu.memory_space<vmem>>, vector<1x128xf32>
    %14 = arith.mulf %2, %12 : vector<1x128xf32>
    %15 = arith.subf %13, %14 : vector<1x128xf32>
    %c0_9 = arith.constant 0 : index
    %c0_10 = arith.constant 0 : index
    %16 = vector.load %arg1[%c0_9, %c0_10] : memref<512x128xf32, #tpu.memory_space<vmem>>, vector<512x128xf32>
    %17 = vector.broadcast %12 : vector<1x128xf32> to vector<512x128xf32>
    %18 = arith.mulf %16, %17 : vector<512x128xf32>
    %19 = vector.broadcast %15 : vector<1x128xf32> to vector<512x128xf32>
    %20 = arith.addf %18, %19 : vector<512x128xf32>
    %cst_11 = arith.constant 0.000000e+00 : f32
    %21 = vector.broadcast %cst_11 : f32 to vector<512x128xf32>
    %22 = arith.maximumf %20, %21 : vector<512x128xf32>
    %23 = arith.truncf %22 : vector<512x128xf32> to vector<512x128xbf16>
    %c0_12 = arith.constant 0 : index
    %c0_13 = arith.constant 0 : index
    %24 = vector.load %arg6[%c0_12, %c0_13] : memref<512x128xbf16, #tpu.memory_space<vmem>>, vector<512x128xbf16>
    tpu.vector_store %arg6[%c0_12, %c0_13], %23 {strides = array<i32>} : memref<512x128xbf16, #tpu.memory_space<vmem>>, vector<512x128xbf16>,
    return
  }
  func.func @transform_0(%arg0: i32) -> (i32, i32) {
    %c0_i32 = arith.constant 0 : i32
    %c0_i32_0 = arith.constant 0 : i32
    return %arg0, %c0_i32 : i32, i32
  }
  func.func @transform_1(%arg0: i32) -> (i32, i32) {
    %c0_i32 = arith.constant 0 : i32
    %c0_i32_0 = arith.constant 0 : i32
    %c0_i32_1 = arith.constant 0 : i32
    return %c0_i32, %c0_i32_0 : i32, i32
  }
  func.func @transform_2(%arg0: i32) -> (i32, i32) {
    %c0_i32 = arith.constant 0 : i32
    %c0_i32_0 = arith.constant 0 : i32
    %c0_i32_1 = arith.constant 0 : i32
    return %c0_i32, %c0_i32_0 : i32, i32
  }
  func.func @transform_3(%arg0: i32) -> (i32, i32) {
    %c0_i32 = arith.constant 0 : i32
    %c0_i32_0 = arith.constant 0 : i32
    %c0_i32_1 = arith.constant 0 : i32
    return %c0_i32, %c0_i32_0 : i32, i32
  }
  func.func @transform_4(%arg0: i32) -> (i32, i32) {
    %c0_i32 = arith.constant 0 : i32
    %c0_i32_0 = arith.constant 0 : i32
    %c0_i32_1 = arith.constant 0 : i32
    return %c0_i32, %c0_i32_0 : i32, i32
  }
  func.func @transform_5(%arg0: i32) -> (i32, i32) {
    %c0_i32 = arith.constant 0 : i32
    %c0_i32_0 = arith.constant 0 : i32
    return %arg0, %c0_i32 : i32, i32
  }
}

module attributes {stable_mosaic.version = 11 : i64} {
  func.func @_bn_proj_add_relu_kernel(%arg0: i32, %arg1: memref<512x128xf32, #tpu.memory_space<vmem>>, %arg2: memref<1x128xf32, #tpu.memory_space<vmem>>, %arg3: memref<1x128xf32, #tpu.memory_space<vmem>>, %arg4: memref<1x128xf32, #tpu.memory_space<vmem>>, %arg5: memref<1x128xf32, #tpu.memory_space<vmem>>, %arg6: memref<512x128xbf16, #tpu.memory_space<vmem>>, %arg7: memref<128x128xbf16, #tpu.memory_space<vmem>>, %arg8: memref<1x128xf32, #tpu.memory_space<vmem>>, %arg9: memref<512x128xf32, #tpu.memory_space<vmem>>) attributes {dimension_semantics = [#tpu.dimension_semantics<parallel>], iteration_bounds = array<i64: 1>, scalar_prefetch = 0 : i64, scratch_operands = 0 : i64, tpu.core_type = #tpu.core_type<tc>, window_params = [{transform_indices = @transform_0, window_bounds = array<i64: 512, 128>}, {pipeline_mode = #tpu.pipeline_mode<synchronous>, transform_indices = @transform_1, window_bounds = array<i64: 1, 128>}, {pipeline_mode = #tpu.pipeline_mode<synchronous>, transform_indices = @transform_2, window_bounds = array<i64: 1, 128>}, {pipeline_mode = #tpu.pipeline_mode<synchronous>, transform_indices = @transform_3, window_bounds = array<i64: 1, 128>}, {pipeline_mode = #tpu.pipeline_mode<synchronous>, transform_indices = @transform_4, window_bounds = array<i64: 1, 128>}, {transform_indices = @transform_5, window_bounds = array<i64: 512, 128>}, {pipeline_mode = #tpu.pipeline_mode<synchronous>, transform_indices = @transform_6, window_bounds = array<i64: 128, 128>}, {pipeline_mode = #tpu.pipeline_mode<synchronous>, transform_indices = @transform_7, window_bounds = array<i64: 1, 128>}, {transform_indices = @transform_8, window_bounds = array<i64: 512, 128>}]} {
    %c0 = arith.constant 0 : index
    %c0_0 = arith.constant 0 : index
    %0 = vector.load %arg2[%c0, %c0_0] : memref<1x128xf32, #tpu.memory_space<vmem>>, vector<1x128xf32>
    %cst = arith.constant 0.001953125 : f32
    %1 = vector.broadcast %cst : f32 to vector<1x128xf32>
    %2 = arith.mulf %0, %1 : vector<1x128xf32>
    %c0_1 = arith.constant 0 : index
    %c0_2 = arith.constant 0 : index
    %3 = vector.load %arg3[%c0_1, %c0_2] : memref<1x128xf32, #tpu.memory_space<vmem>>, vector<1x128xf32>
    %cst_3 = arith.constant 0.001953125 : f32
    %4 = vector.broadcast %cst_3 : f32 to vector<1x128xf32>
    %5 = arith.mulf %3, %4 : vector<1x128xf32>
    %6 = arith.mulf %2, %2 : vector<1x128xf32>
    %7 = arith.subf %5, %6 : vector<1x128xf32>
    %c0_4 = arith.constant 0 : index
    %c0_5 = arith.constant 0 : index
    %8 = vector.load %arg4[%c0_4, %c0_5] : memref<1x128xf32, #tpu.memory_space<vmem>>, vector<1x128xf32>
    %cst_6 = arith.constant 9.99999974E-6 : f32
    %9 = vector.broadcast %cst_6 : f32 to vector<1x128xf32>
    %10 = arith.addf %7, %9 : vector<1x128xf32>
    %11 = math.rsqrt %10 : vector<1x128xf32>
    %12 = arith.mulf %8, %11 : vector<1x128xf32>
    %c0_7 = arith.constant 0 : index
    %c0_8 = arith.constant 0 : index
    %13 = vector.load %arg5[%c0_7, %c0_8] : memref<1x128xf32, #tpu.memory_space<vmem>>, vector<1x128xf32>
    %14 = arith.mulf %2, %12 : vector<1x128xf32>
    %15 = arith.subf %13, %14 : vector<1x128xf32>
    %c0_9 = arith.constant 0 : index
    %c0_10 = arith.constant 0 : index
    %16 = vector.load %arg6[%c0_9, %c0_10] : memref<512x128xbf16, #tpu.memory_space<vmem>>, vector<512x128xbf16>
    %c0_11 = arith.constant 0 : index
    %c0_12 = arith.constant 0 : index
    %17 = vector.load %arg7[%c0_11, %c0_12] : memref<128x128xbf16, #tpu.memory_space<vmem>>, vector<128x128xbf16>
    %cst_13 = arith.constant dense<0.000000e+00> : vector<512x128xf32>
    %18 = tpu.matmul %16, %17, %cst_13 {dimension_numbers = #tpu.dot_dimension_numbers<[1], [0], [0], [1], [0, 0, 1, 1], [], []>} : vector<512x128xbf16>, vector<128x128xbf16>, vector<512x128xf32> -> vector<512x128xf32>
    %c0_14 = arith.constant 0 : index
    %c0_15 = arith.constant 0 : index
    %19 = vector.load %arg8[%c0_14, %c0_15] : memref<1x128xf32, #tpu.memory_space<vmem>>, vector<1x128xf32>
    %20 = vector.broadcast %19 : vector<1x128xf32> to vector<512x128xf32>
    %21 = arith.addf %18, %20 : vector<512x128xf32>
    %c0_16 = arith.constant 0 : index
    %c0_17 = arith.constant 0 : index
    %22 = vector.load %arg1[%c0_16, %c0_17] : memref<512x128xf32, #tpu.memory_space<vmem>>, vector<512x128xf32>
    %23 = vector.broadcast %12 : vector<1x128xf32> to vector<512x128xf32>
    %24 = arith.mulf %22, %23 : vector<512x128xf32>
    %25 = vector.broadcast %15 : vector<1x128xf32> to vector<512x128xf32>
    %26 = arith.addf %24, %25 : vector<512x128xf32>
    %27 = arith.addf %26, %21 : vector<512x128xf32>
    %cst_18 = arith.constant 0.000000e+00 : f32
    %28 = vector.broadcast %cst_18 : f32 to vector<512x128xf32>
    %29 = arith.maximumf %27, %28 : vector<512x128xf32>
    %c0_19 = arith.constant 0 : index
    %c0_20 = arith.constant 0 : index
    %30 = vector.load %arg9[%c0_19, %c0_20] : memref<512x128xf32, #tpu.memory_space<vmem>>, vector<512x128xf32>
    tpu.vector_store %arg9[%c0_19, %c0_20], %29 {strides = array<i32>} : memref<512x128xf32, #tpu.memory_space<vmem>>, vector<512x128xf32>,
    return
  }
  func.func @transform_0(%arg0: i32) -> (i32, i32) {
    %c0_i32 = arith.constant 0 : i32
    %c0_i32_0 = arith.constant 0 : i32
    return %arg0, %c0_i32 : i32, i32
  }
  func.func @transform_1(%arg0: i32) -> (i32, i32) {
    %c0_i32 = arith.constant 0 : i32
    %c0_i32_0 = arith.constant 0 : i32
    %c0_i32_1 = arith.constant 0 : i32
    return %c0_i32, %c0_i32_0 : i32, i32
  }
  func.func @transform_2(%arg0: i32) -> (i32, i32) {
    %c0_i32 = arith.constant 0 : i32
    %c0_i32_0 = arith.constant 0 : i32
    %c0_i32_1 = arith.constant 0 : i32
    return %c0_i32, %c0_i32_0 : i32, i32
  }
  func.func @transform_3(%arg0: i32) -> (i32, i32) {
    %c0_i32 = arith.constant 0 : i32
    %c0_i32_0 = arith.constant 0 : i32
    %c0_i32_1 = arith.constant 0 : i32
    return %c0_i32, %c0_i32_0 : i32, i32
  }
  func.func @transform_4(%arg0: i32) -> (i32, i32) {
    %c0_i32 = arith.constant 0 : i32
    %c0_i32_0 = arith.constant 0 : i32
    %c0_i32_1 = arith.constant 0 : i32
    return %c0_i32, %c0_i32_0 : i32, i32
  }
  func.func @transform_5(%arg0: i32) -> (i32, i32) {
    %c0_i32 = arith.constant 0 : i32
    %c0_i32_0 = arith.constant 0 : i32
    return %arg0, %c0_i32 : i32, i32
  }
  func.func @transform_6(%arg0: i32) -> (i32, i32) {
    %c0_i32 = arith.constant 0 : i32
    %c0_i32_0 = arith.constant 0 : i32
    %c0_i32_1 = arith.constant 0 : i32
    return %c0_i32, %c0_i32_0 : i32, i32
  }
  func.func @transform_7(%arg0: i32) -> (i32, i32) {
    %c0_i32 = arith.constant 0 : i32
    %c0_i32_0 = arith.constant 0 : i32
    %c0_i32_1 = arith.constant 0 : i32
    return %c0_i32, %c0_i32_0 : i32, i32
  }
  func.func @transform_8(%arg0: i32) -> (i32, i32) {
    %c0_i32 = arith.constant 0 : i32
    %c0_i32_0 = arith.constant 0 : i32
    return %arg0, %c0_i32 : i32, i32
  }
}

</mosaic_0001>

<llo_original>
// kernel: basic_block_forward.5
$region0: #{basic_block_forward.5}
  #allocation0 [shape = 'u32[]', space=smem, size = 0x4, offset = 0x4, fixed_abs, tag = 'smem constant byte address 0x4 - core index']
  #allocation1 [shape = 'u32[144,128]{1,0:T(1,128)}', space=vmem, size = 0x12000, scoped, tag = 'internal scratch']
  %s0 = inlined_call_operand.vmem [shape: f32[512,128], index: 0, kind: input, shape index: {}]
  %s1 = inlined_call_operand.vmem [shape: f32[1,128], index: 1, kind: input, shape index: {}]
  %s2 = inlined_call_operand.vmem [shape: f32[1,128], index: 2, kind: input, shape index: {}]
  %s3 = inlined_call_operand.vmem [shape: f32[1,128], index: 3, kind: input, shape index: {}]
  %s4 = inlined_call_operand.vmem [shape: f32[1,128], index: 4, kind: input, shape index: {}]
  %s5 = inlined_call_operand.vmem [shape: bf16[512,128], index: 5, kind: output, shape index: {}]
  %s6 = sld [smem:[#allocation0]]
  $region30: #{basic_block_forward.5} parent=0
    _
  %s8 = ssub.s32 1, %s6
  %s9 = scalar_select 0, %s8, %s6
  // Predicated region
  $region2: #{basic_block_forward.5} parent=0 // pred_check
    _
  $region3: #{basic_block_forward.5} parent=0 // pred_check_branch
    %11 = sbr.rel (0) target = $region5
  $region4: #{basic_block_forward.5} parent=0 // pred_region
    _
  $region5: #{basic_block_forward.5} parent=0 // pred_fallthru
    _
  // Predicated region
  $region6: #{basic_block_forward.5} parent=0 // pred_check
    _
  $region7: #{basic_block_forward.5} parent=0 // pred_check_branch
    %13 = sbr.rel (0) target = $region9
  $region8: #{basic_block_forward.5} parent=0 // pred_region
    _
  $region9: #{basic_block_forward.5} parent=0 // pred_fallthru
    _
  // Predicated region
  $region10: #{basic_block_forward.5} parent=0 // pred_check
    _
  $region11: #{basic_block_forward.5} parent=0 // pred_check_branch
    %15 = sbr.rel (0) target = $region13
  $region12: #{basic_block_forward.5} parent=0 // pred_region
    _
  $region13: #{basic_block_forward.5} parent=0 // pred_fallthru
    _
  // Predicated region
  $region14: #{basic_block_forward.5} parent=0 // pred_check
    _
  $region15: #{basic_block_forward.5} parent=0 // pred_check_branch
    %17 = sbr.rel (0) target = $region17
  $region16: #{basic_block_forward.5} parent=0 // pred_region
    _
  $region17: #{basic_block_forward.5} parent=0 // pred_fallthru
    _
  // Predicated region
  $region18: #{basic_block_forward.5} parent=0 // pred_check
    _
  $region19: #{basic_block_forward.5} parent=0 // pred_check_branch
    %19 = sbr.rel (0) target = $region21
  $region20: #{basic_block_forward.5} parent=0 // pred_region
    _
  $region21: #{basic_block_forward.5} parent=0 // pred_fallthru
    _
  %v20 = vld [vmem:[%s1] sm:$0x1]
  %v21 = vmul.f32 %v20, 0.001953125
  %v22 = vld [vmem:[%s2] sm:$0x1]
  %v23 = vmul.f32 %v22, 0.001953125
  %v24 = vmul.f32 %v21, %v21
  %v25 = vsub.f32 %v23, %v24
  %v26 = vld [vmem:[%s3] sm:$0x1]
  %v27 = vadd.f32 %v25, 1e-05
  %v28 = vrsqrt.pop %v27
  %v29 = vmul.f32 %v26, %v28
  %v30 = vld [vmem:[%s4] sm:$0x1]
  %v31 = vmul.f32 %v21, %v29
  %v32 = vsub.f32 %v30, %v31
  %v33 = vld [vmem:[%s0] sm:$0xff]
  %v34 = vld [vmem:[%s0 + $0x8] sm:$0xff]
  %v35 = vld [vmem:[%s0 + $0x10] sm:$0xff]
  %v36 = vld [vmem:[%s0 + $0x18] sm:$0xff]
  %v37 = vld [vmem:[%s0 + $0x20] sm:$0xff]
  %v38 = vld [vmem:[%s0 + $0x28] sm:$0xff]
  %v39 = vld [vmem:[%s0 + $0x30] sm:$0xff]
  %v40 = vld [vmem:[%s0 + $0x38] sm:$0xff]
  %v41 = vld [vmem:[%s0 + $0x40] sm:$0xff]
  %v42 = vld [vmem:[%s0 + $0x48] sm:$0xff]
  %v43 = vld [vmem:[%s0 + $0x50] sm:$0xff]
  %v44 = vld [vmem:[%s0 + $0x58] sm:$0xff]
  %v45 = vld [vmem:[%s0 + $0x60] sm:$0xff]
  %v46 = vld [vmem:[%s0 + $0x68] sm:$0xff]
  %v47 = vld [vmem:[%s0 + $0x70] sm:$0xff]
  %v48 = vld [vmem:[%s0 + $0x78] sm:$0xff]
  %v49 = vld [vmem:[%s0 + $0x80] sm:$0xff]
  %v50 = vld [vmem:[%s0 + $0x88] sm:$0xff]
  %v51 = vld [vmem:[%s0 + $0x90] sm:$0xff]
  %v52 = vld [vmem:[%s0 + $0x98] sm:$0xff]
  %v53 = vld [vmem:[%s0 + $0xa0] sm:$0xff]
  %v54 = vld [vmem:[%s0 + $0xa8] sm:$0xff]
  %v55 = vld [vmem:[%s0 + $0xb0] sm:$0xff]
  %v56 = vld [vmem:[%s0 + $0xb8] sm:$0xff]
  %v57 = vld [vmem:[%s0 + $0xc0] sm:$0xff]
  %v58 = vld [vmem:[%s0 + $0xc8] sm:$0xff]
  %v59 = vld [vmem:[%s0 + $0xd0] sm:$0xff]
  %v60 = vld [vmem:[%s0 + $0xd8] sm:$0xff]
  %v61 = vld [vmem:[%s0 + $0xe0] sm:$0xff]
  %v62 = vld [vmem:[%s0 + $0xe8] sm:$0xff]
  %v63 = vld [vmem:[%s0 + $0xf0] sm:$0xff]
  %v64 = vld [vmem:[%s0 + $0xf8] sm:$0xff]
  %v65 = vld [vmem:[%s0 + $0x100] sm:$0xff]
  %v66 = vld [vmem:[%s0 + $0x108] sm:$0xff]
  %v67 = vld [vmem:[%s0 + $0x110] sm:$0xff]
  %v68 = vld [vmem:[%s0 + $0x118] sm:$0xff]
  %v69 = vld [vmem:[%s0 + $0x120] sm:$0xff]
  %v70 = vld [vmem:[%s0 + $0x128] sm:$0xff]
  %v71 = vld [vmem:[%s0 + $0x130] sm:$0xff]
  %v72 = vld [vmem:[%s0 + $0x138] sm:$0xff]
  %v73 = vld [vmem:[%s0 + $0x140] sm:$0xff]
  %v74 = vld [vmem:[%s0 + $0x148] sm:$0xff]
  %v75 = vld [vmem:[%s0 + $0x150] sm:$0xff]
  %v76 = vld [vmem:[%s0 + $0x158] sm:$0xff]
  %v77 = vld [vmem:[%s0 + $0x160] sm:$0xff]
  %v78 = vld [vmem:[%s0 + $0x168] sm:$0xff]
  %v79 = vld [vmem:[%s0 + $0x170] sm:$0xff]
  %v80 = vld [vmem:[%s0 + $0x178] sm:$0xff]
  %v81 = vld [vmem:[%s0 + $0x180] sm:$0xff]
  %v82 = vld [vmem:[%s0 + $0x188] sm:$0xff]
  %v83 = vld [vmem:[%s0 + $0x190] sm:$0xff]
  %v84 = vld [vmem:[%s0 + $0x198] sm:$0xff]
  %v85 = vld [vmem:[%s0 + $0x1a0] sm:$0xff]
  %v86 = vld [vmem:[%s0 + $0x1a8] sm:$0xff]
  %v87 = vld [vmem:[%s0 + $0x1b0] sm:$0xff]
  %v88 = vld [vmem:[%s0 + $0x1b8] sm:$0xff]
  %v89 = vld [vmem:[%s0 + $0x1c0] sm:$0xff]
  %v90 = vld [vmem:[%s0 + $0x1c8] sm:$0xff]
  %v91 = vld [vmem:[%s0 + $0x1d0] sm:$0xff]
  %v92 = vld [vmem:[%s0 + $0x1d8] sm:$0xff]
  %v93 = vld [vmem:[%s0 + $0x1e0] sm:$0xff]
  %v94 = vld [vmem:[%s0 + $0x1e8] sm:$0xff]
  %v95 = vld [vmem:[%s0 + $0x1f0] sm:$0xff]
  %v96 = vld [vmem:[%s0 + $0x1f8] sm:$0xff]
  %v98 = vlaneseq
  %v99 = vshrl.u32 %v98, 7
  %v100 = vsub.s32 0, %v99
  %v101 = vrot.slane %v29, %v100
  %v103 = vmul.f32 %v33, %v101
  %v104 = vmul.f32 %v34, %v101
  %v105 = vmul.f32 %v35, %v101
  %v106 = vmul.f32 %v36, %v101
  %v107 = vmul.f32 %v37, %v101
  %v108 = vmul.f32 %v38, %v101
  %v109 = vmul.f32 %v39, %v101
  %v110 = vmul.f32 %v40, %v101
  %v111 = vmul.f32 %v41, %v101
  %v112 = vmul.f32 %v42, %v101
  %v113 = vmul.f32 %v43, %v101
  %v114 = vmul.f32 %v44, %v101
  %v115 = vmul.f32 %v45, %v101
  %v116 = vmul.f32 %v46, %v101
  %v117 = vmul.f32 %v47, %v101
  %v118 = vmul.f32 %v48, %v101
  %v119 = vmul.f32 %v49, %v101
  %v120 = vmul.f32 %v50, %v101
  %v121 = vmul.f32 %v51, %v101
  %v122 = vmul.f32 %v52, %v101
  %v123 = vmul.f32 %v53, %v101
  %v124 = vmul.f32 %v54, %v101
  %v125 = vmul.f32 %v55, %v101
  %v126 = vmul.f32 %v56, %v101
  %v127 = vmul.f32 %v57, %v101
  %v128 = vmul.f32 %v58, %v101
  %v129 = vmul.f32 %v59, %v101
  %v130 = vmul.f32 %v60, %v101
  %v131 = vmul.f32 %v61, %v101
  %v132 = vmul.f32 %v62, %v101
  %v133 = vmul.f32 %v63, %v101
  %v134 = vmul.f32 %v64, %v101
  %v135 = vmul.f32 %v65, %v101
  %v136 = vmul.f32 %v66, %v101
  %v137 = vmul.f32 %v67, %v101
  %v138 = vmul.f32 %v68, %v101
  %v139 = vmul.f32 %v69, %v101
  %v140 = vmul.f32 %v70, %v101
  %v141 = vmul.f32 %v71, %v101
  %v142 = vmul.f32 %v72, %v101
  %v143 = vmul.f32 %v73, %v101
  %v144 = vmul.f32 %v74, %v101
  %v145 = vmul.f32 %v75, %v101
  %v146 = vmul.f32 %v76, %v101
  %v147 = vmul.f32 %v77, %v101
  %v148 = vmul.f32 %v78, %v101
  %v149 = vmul.f32 %v79, %v101
  %v150 = vmul.f32 %v80, %v101
  %v151 = vmul.f32 %v81, %v101
  %v152 = vmul.f32 %v82, %v101
  %v153 = vmul.f32 %v83, %v101
  %v154 = vmul.f32 %v84, %v101
  %v155 = vmul.f32 %v85, %v101
  %v156 = vmul.f32 %v86, %v101
  %v157 = vmul.f32 %v87, %v101
  %v158 = vmul.f32 %v88, %v101
  %v159 = vmul.f32 %v89, %v101
  %v160 = vmul.f32 %v90, %v101
  %v161 = vmul.f32 %v91, %v101
  %v162 = vmul.f32 %v92, %v101
  %v163 = vmul.f32 %v93, %v101
  %v164 = vmul.f32 %v94, %v101
  %v165 = vmul.f32 %v95, %v101
  %v166 = vmul.f32 %v96, %v101
  %v168 = vlaneseq
  %v169 = vshrl.u32 %v168, 7
  %v170 = vsub.s32 0, %v169
  %v171 = vrot.slane %v32, %v170
  %v173 = vadd.f32 %v103, %v171
  %v174 = vadd.f32 %v104, %v171
  %v175 = vadd.f32 %v105, %v171
  %v176 = vadd.f32 %v106, %v171
  %v177 = vadd.f32 %v107, %v171
  %v178 = vadd.f32 %v108, %v171
  %v179 = vadd.f32 %v109, %v171
  %v180 = vadd.f32 %v110, %v171
  %v181 = vadd.f32 %v111, %v171
  %v182 = vadd.f32 %v112, %v171
  %v183 = vadd.f32 %v113, %v171
  %v184 = vadd.f32 %v114, %v171
  %v185 = vadd.f32 %v115, %v171
  %v186 = vadd.f32 %v116, %v171
  %v187 = vadd.f32 %v117, %v171
  %v188 = vadd.f32 %v118, %v171
  %v189 = vadd.f32 %v119, %v171
  %v190 = vadd.f32 %v120, %v171
  %v191 = vadd.f32 %v121, %v171
  %v192 = vadd.f32 %v122, %v171
  %v193 = vadd.f32 %v123, %v171
  %v194 = vadd.f32 %v124, %v171
  %v195 = vadd.f32 %v125, %v171
  %v196 = vadd.f32 %v126, %v171
  %v197 = vadd.f32 %v127, %v171
  %v198 = vadd.f32 %v128, %v171
  %v199 = vadd.f32 %v129, %v171
  %v200 = vadd.f32 %v130, %v171
  %v201 = vadd.f32 %v131, %v171
  %v202 = vadd.f32 %v132, %v171
  %v203 = vadd.f32 %v133, %v171
  %v204 = vadd.f32 %v134, %v171
  %v205 = vadd.f32 %v135, %v171
  %v206 = vadd.f32 %v136, %v171
  %v207 = vadd.f32 %v137, %v171
  %v208 = vadd.f32 %v138, %v171
  %v209 = vadd.f32 %v139, %v171
  %v210 = vadd.f32 %v140, %v171
  %v211 = vadd.f32 %v141, %v171
  %v212 = vadd.f32 %v142, %v171
  %v213 = vadd.f32 %v143, %v171
  %v214 = vadd.f32 %v144, %v171
  %v215 = vadd.f32 %v145, %v171
  %v216 = vadd.f32 %v146, %v171
  %v217 = vadd.f32 %v147, %v171
  %v218 = vadd.f32 %v148, %v171
  %v219 = vadd.f32 %v149, %v171
  %v220 = vadd.f32 %v150, %v171
  %v221 = vadd.f32 %v151, %v171
  %v222 = vadd.f32 %v152, %v171
  %v223 = vadd.f32 %v153, %v171
  %v224 = vadd.f32 %v154, %v171
  %v225 = vadd.f32 %v155, %v171
  %v226 = vadd.f32 %v156, %v171
  %v227 = vadd.f32 %v157, %v171
  %v228 = vadd.f32 %v158, %v171
  %v229 = vadd.f32 %v159, %v171
  %v230 = vadd.f32 %v160, %v171
  %v231 = vadd.f32 %v161, %v171
  %v232 = vadd.f32 %v162, %v171
  %v233 = vadd.f32 %v163, %v171
  %v234 = vadd.f32 %v164, %v171
  %v235 = vadd.f32 %v165, %v171
  %v236 = vadd.f32 %v166, %v171
  %v237 = vmax.f32 %v173, 0.0
  %v238 = vmax.f32 %v174, 0.0
  %v239 = vmax.f32 %v175, 0.0
  %v240 = vmax.f32 %v176, 0.0
  %v241 = vmax.f32 %v177, 0.0
  %v242 = vmax.f32 %v178, 0.0
  %v243 = vmax.f32 %v179, 0.0
  %v244 = vmax.f32 %v180, 0.0
  %v245 = vmax.f32 %v181, 0.0
  %v246 = vmax.f32 %v182, 0.0
  %v247 = vmax.f32 %v183, 0.0
  %v248 = vmax.f32 %v184, 0.0
  %v249 = vmax.f32 %v185, 0.0
  %v250 = vmax.f32 %v186, 0.0
  %v251 = vmax.f32 %v187, 0.0
  %v252 = vmax.f32 %v188, 0.0
  %v253 = vmax.f32 %v189, 0.0
  %v254 = vmax.f32 %v190, 0.0
  %v255 = vmax.f32 %v191, 0.0
  %v256 = vmax.f32 %v192, 0.0
  %v257 = vmax.f32 %v193, 0.0
  %v258 = vmax.f32 %v194, 0.0
  %v259 = vmax.f32 %v195, 0.0
  %v260 = vmax.f32 %v196, 0.0
  %v261 = vmax.f32 %v197, 0.0
  %v262 = vmax.f32 %v198, 0.0
  %v263 = vmax.f32 %v199, 0.0
  %v264 = vmax.f32 %v200, 0.0
  %v265 = vmax.f32 %v201, 0.0
  %v266 = vmax.f32 %v202, 0.0
  %v267 = vmax.f32 %v203, 0.0
  %v268 = vmax.f32 %v204, 0.0
  %v269 = vmax.f32 %v205, 0.0
  %v270 = vmax.f32 %v206, 0.0
  %v271 = vmax.f32 %v207, 0.0
  %v272 = vmax.f32 %v208, 0.0
  %v273 = vmax.f32 %v209, 0.0
  %v274 = vmax.f32 %v210, 0.0
  %v275 = vmax.f32 %v211, 0.0
  %v276 = vmax.f32 %v212, 0.0
  %v277 = vmax.f32 %v213, 0.0
  %v278 = vmax.f32 %v214, 0.0
  %v279 = vmax.f32 %v215, 0.0
  %v280 = vmax.f32 %v216, 0.0
  %v281 = vmax.f32 %v217, 0.0
  %v282 = vmax.f32 %v218, 0.0
  %v283 = vmax.f32 %v219, 0.0
  %v284 = vmax.f32 %v220, 0.0
  %v285 = vmax.f32 %v221, 0.0
  %v286 = vmax.f32 %v222, 0.0
  %v287 = vmax.f32 %v223, 0.0
  %v288 = vmax.f32 %v224, 0.0
  %v289 = vmax.f32 %v225, 0.0
  %v290 = vmax.f32 %v226, 0.0
  %v291 = vmax.f32 %v227, 0.0
  %v292 = vmax.f32 %v228, 0.0
  %v293 = vmax.f32 %v229, 0.0
  %v294 = vmax.f32 %v230, 0.0
  %v295 = vmax.f32 %v231, 0.0
  %v296 = vmax.f32 %v232, 0.0
  %v297 = vmax.f32 %v233, 0.0
  %v298 = vmax.f32 %v234, 0.0
  %v299 = vmax.f32 %v235, 0.0
  %v300 = vmax.f32 %v236, 0.0
  %v301 = vpack.c.bf16 %v238, %v237
  %v302 = vpack.c.bf16 %v240, %v239
  %v303 = vpack.c.bf16 %v242, %v241
  %v304 = vpack.c.bf16 %v244, %v243
  %v305 = vpack.c.bf16 %v246, %v245
  %v306 = vpack.c.bf16 %v248, %v247
  %v307 = vpack.c.bf16 %v250, %v249
  %v308 = vpack.c.bf16 %v252, %v251
  %v309 = vpack.c.bf16 %v254, %v253
  %v310 = vpack.c.bf16 %v256, %v255
  %v311 = vpack.c.bf16 %v258, %v257
  %v312 = vpack.c.bf16 %v260, %v259
  %v313 = vpack.c.bf16 %v262, %v261
  %v314 = vpack.c.bf16 %v264, %v263
  %v315 = vpack.c.bf16 %v266, %v265
  %v316 = vpack.c.bf16 %v268, %v267
  %v317 = vpack.c.bf16 %v270, %v269
  %v318 = vpack.c.bf16 %v272, %v271
  %v319 = vpack.c.bf16 %v274, %v273
  %v320 = vpack.c.bf16 %v276, %v275
  %v321 = vpack.c.bf16 %v278, %v277
  %v322 = vpack.c.bf16 %v280, %v279
  %v323 = vpack.c.bf16 %v282, %v281
  %v324 = vpack.c.bf16 %v284, %v283
  %v325 = vpack.c.bf16 %v286, %v285
  %v326 = vpack.c.bf16 %v288, %v287
  %v327 = vpack.c.bf16 %v290, %v289
  %v328 = vpack.c.bf16 %v292, %v291
  %v329 = vpack.c.bf16 %v294, %v293
  %v330 = vpack.c.bf16 %v296, %v295
  %v331 = vpack.c.bf16 %v298, %v297
  %v332 = vpack.c.bf16 %v300, %v299
  %v365 = vunpack.c.l.b16 %v301
  %v366 = vunpack.c.h.b16 %v301
  %v367 = vunpack.c.l.b16 %v302
  %v368 = vunpack.c.h.b16 %v302
  %v369 = vunpack.c.l.b16 %v303
  %v370 = vunpack.c.h.b16 %v303
  %v371 = vunpack.c.l.b16 %v304
  %v372 = vunpack.c.h.b16 %v304
  %v373 = vunpack.c.l.b16 %v305
  %v374 = vunpack.c.h.b16 %v305
  %v375 = vunpack.c.l.b16 %v306
  %v376 = vunpack.c.h.b16 %v306
  %v377 = vunpack.c.l.b16 %v307
  %v378 = vunpack.c.h.b16 %v307
  %v379 = vunpack.c.l.b16 %v308
  %v380 = vunpack.c.h.b16 %v308
  %v381 = vunpack.c.l.b16 %v309
  %v382 = vunpack.c.h.b16 %v309
  %v383 = vunpack.c.l.b16 %v310
  %v384 = vunpack.c.h.b16 %v310
  %v385 = vunpack.c.l.b16 %v311
  %v386 = vunpack.c.h.b16 %v311
  %v387 = vunpack.c.l.b16 %v312
  %v388 = vunpack.c.h.b16 %v312
  %v389 = vunpack.c.l.b16 %v313
  %v390 = vunpack.c.h.b16 %v313
  %v391 = vunpack.c.l.b16 %v314
  %v392 = vunpack.c.h.b16 %v314
  %v393 = vunpack.c.l.b16 %v315
  %v394 = vunpack.c.h.b16 %v315
  %v395 = vunpack.c.l.b16 %v316
  %v396 = vunpack.c.h.b16 %v316
  %v397 = vunpack.c.l.b16 %v317
  %v398 = vunpack.c.h.b16 %v317
  %v399 = vunpack.c.l.b16 %v318
  %v400 = vunpack.c.h.b16 %v318
  %v401 = vunpack.c.l.b16 %v319
  %v402 = vunpack.c.h.b16 %v319
  %v403 = vunpack.c.l.b16 %v320
  %v404 = vunpack.c.h.b16 %v320
  %v405 = vunpack.c.l.b16 %v321
  %v406 = vunpack.c.h.b16 %v321
  %v407 = vunpack.c.l.b16 %v322
  %v408 = vunpack.c.h.b16 %v322
  %v409 = vunpack.c.l.b16 %v323
  %v410 = vunpack.c.h.b16 %v323
  %v411 = vunpack.c.l.b16 %v324
  %v412 = vunpack.c.h.b16 %v324
  %v413 = vunpack.c.l.b16 %v325
  %v414 = vunpack.c.h.b16 %v325
  %v415 = vunpack.c.l.b16 %v326
  %v416 = vunpack.c.h.b16 %v326
  %v417 = vunpack.c.l.b16 %v327
  %v418 = vunpack.c.h.b16 %v327
  %v419 = vunpack.c.l.b16 %v328
  %v420 = vunpack.c.h.b16 %v328
  %v421 = vunpack.c.l.b16 %v329
  %v422 = vunpack.c.h.b16 %v329
  %v423 = vunpack.c.l.b16 %v330
  %v424 = vunpack.c.h.b16 %v330
  %v425 = vunpack.c.l.b16 %v331
  %v426 = vunpack.c.h.b16 %v331
  %v427 = vunpack.c.l.b16 %v332
  %v428 = vunpack.c.h.b16 %v332
  %v429 = vpack.c.b16 %v365, %v365
  %v430 = vpack.c.b16 %v366, %v366
  %v431 = vpack.c.b16 %v367, %v367
  %v432 = vpack.c.b16 %v368, %v368
  %v433 = vpack.c.b16 %v369, %v369
  %v434 = vpack.c.b16 %v370, %v370
  %v435 = vpack.c.b16 %v371, %v371
  %v436 = vpack.c.b16 %v372, %v372
  %v437 = vpack.c.b16 %v373, %v373
  %v438 = vpack.c.b16 %v374, %v374
  %v439 = vpack.c.b16 %v375, %v375
  %v440 = vpack.c.b16 %v376, %v376
  %v441 = vpack.c.b16 %v377, %v377
  %v442 = vpack.c.b16 %v378, %v378
  %v443 = vpack.c.b16 %v379, %v379
  %v444 = vpack.c.b16 %v380, %v380
  %v445 = vpack.c.b16 %v381, %v381
  %v446 = vpack.c.b16 %v382, %v382
  %v447 = vpack.c.b16 %v383, %v383
  %v448 = vpack.c.b16 %v384, %v384
  %v449 = vpack.c.b16 %v385, %v385
  %v450 = vpack.c.b16 %v386, %v386
  %v451 = vpack.c.b16 %v387, %v387
  %v452 = vpack.c.b16 %v388, %v388
  %v453 = vpack.c.b16 %v389, %v389
  %v454 = vpack.c.b16 %v390, %v390
  %v455 = vpack.c.b16 %v391, %v391
  %v456 = vpack.c.b16 %v392, %v392
  %v457 = vpack.c.b16 %v393, %v393
  %v458 = vpack.c.b16 %v394, %v394
  %v459 = vpack.c.b16 %v395, %v395
  %v460 = vpack.c.b16 %v396, %v396
  %v461 = vpack.c.b16 %v397, %v397
  %v462 = vpack.c.b16 %v398, %v398
  %v463 = vpack.c.b16 %v399, %v399
  %v464 = vpack.c.b16 %v400, %v400
  %v465 = vpack.c.b16 %v401, %v401
  %v466 = vpack.c.b16 %v402, %v402
  %v467 = vpack.c.b16 %v403, %v403
  %v468 = vpack.c.b16 %v404, %v404
  %v469 = vpack.c.b16 %v405, %v405
  %v470 = vpack.c.b16 %v406, %v406
  %v471 = vpack.c.b16 %v407, %v407
  %v472 = vpack.c.b16 %v408, %v408
  %v473 = vpack.c.b16 %v409, %v409
  %v474 = vpack.c.b16 %v410, %v410
  %v475 = vpack.c.b16 %v411, %v411
  %v476 = vpack.c.b16 %v412, %v412
  %v477 = vpack.c.b16 %v413, %v413
  %v478 = vpack.c.b16 %v414, %v414
  %v479 = vpack.c.b16 %v415, %v415
  %v480 = vpack.c.b16 %v416, %v416
  %v481 = vpack.c.b16 %v417, %v417
  %v482 = vpack.c.b16 %v418, %v418
  %v483 = vpack.c.b16 %v419, %v419
  %v484 = vpack.c.b16 %v420, %v420
  %v485 = vpack.c.b16 %v421, %v421
  %v486 = vpack.c.b16 %v422, %v422
  %v487 = vpack.c.b16 %v423, %v423
  %v488 = vpack.c.b16 %v424, %v424
  %v489 = vpack.c.b16 %v425, %v425
  %v490 = vpack.c.b16 %v426, %v426
  %v491 = vpack.c.b16 %v427, %v427
  %v492 = vpack.c.b16 %v428, %v428
  %557 = vst [vmem:[%s5] sm:$0xf] %v429
  %558 = vst [vmem:[%s5 + $0x4] sm:$0xf] %v430
  %559 = vst [vmem:[%s5 + $0x8] sm:$0xf] %v431
  %560 = vst [vmem:[%s5 + $0xc] sm:$0xf] %v432
  %561 = vst [vmem:[%s5 + $0x10] sm:$0xf] %v433
  %562 = vst [vmem:[%s5 + $0x14] sm:$0xf] %v434
  %563 = vst [vmem:[%s5 + $0x18] sm:$0xf] %v435
  %564 = vst [vmem:[%s5 + $0x1c] sm:$0xf] %v436
  %565 = vst [vmem:[%s5 + $0x20] sm:$0xf] %v437
  %566 = vst [vmem:[%s5 + $0x24] sm:$0xf] %v438
  %567 = vst [vmem:[%s5 + $0x28] sm:$0xf] %v439
  %568 = vst [vmem:[%s5 + $0x2c] sm:$0xf] %v440
  %569 = vst [vmem:[%s5 + $0x30] sm:$0xf] %v441
  %570 = vst [vmem:[%s5 + $0x34] sm:$0xf] %v442
  %571 = vst [vmem:[%s5 + $0x38] sm:$0xf] %v443
  %572 = vst [vmem:[%s5 + $0x3c] sm:$0xf] %v444
  %573 = vst [vmem:[%s5 + $0x40] sm:$0xf] %v445
  %574 = vst [vmem:[%s5 + $0x44] sm:$0xf] %v446
  %575 = vst [vmem:[%s5 + $0x48] sm:$0xf] %v447
  %576 = vst [vmem:[%s5 + $0x4c] sm:$0xf] %v448
  %577 = vst [vmem:[%s5 + $0x50] sm:$0xf] %v449
  %578 = vst [vmem:[%s5 + $0x54] sm:$0xf] %v450
  %579 = vst [vmem:[%s5 + $0x58] sm:$0xf] %v451
  %580 = vst [vmem:[%s5 + $0x5c] sm:$0xf] %v452
  %581 = vst [vmem:[%s5 + $0x60] sm:$0xf] %v453
  %582 = vst [vmem:[%s5 + $0x64] sm:$0xf] %v454
  %583 = vst [vmem:[%s5 + $0x68] sm:$0xf] %v455
  %584 = vst [vmem:[%s5 + $0x6c] sm:$0xf] %v456
  %585 = vst [vmem:[%s5 + $0x70] sm:$0xf] %v457
  %586 = vst [vmem:[%s5 + $0x74] sm:$0xf] %v458
  %587 = vst [vmem:[%s5 + $0x78] sm:$0xf] %v459
  %588 = vst [vmem:[%s5 + $0x7c] sm:$0xf] %v460
  %589 = vst [vmem:[%s5 + $0x80] sm:$0xf] %v461
  %590 = vst [vmem:[%s5 + $0x84] sm:$0xf] %v462
  %591 = vst [vmem:[%s5 + $0x88] sm:$0xf] %v463
  %592 = vst [vmem:[%s5 + $0x8c] sm:$0xf] %v464
  %593 = vst [vmem:[%s5 + $0x90] sm:$0xf] %v465
  %594 = vst [vmem:[%s5 + $0x94] sm:$0xf] %v466
  %595 = vst [vmem:[%s5 + $0x98] sm:$0xf] %v467
  %596 = vst [vmem:[%s5 + $0x9c] sm:$0xf] %v468
  %597 = vst [vmem:[%s5 + $0xa0] sm:$0xf] %v469
  %598 = vst [vmem:[%s5 + $0xa4] sm:$0xf] %v470
  %599 = vst [vmem:[%s5 + $0xa8] sm:$0xf] %v471
  %600 = vst [vmem:[%s5 + $0xac] sm:$0xf] %v472
  %601 = vst [vmem:[%s5 + $0xb0] sm:$0xf] %v473
  %602 = vst [vmem:[%s5 + $0xb4] sm:$0xf] %v474
  %603 = vst [vmem:[%s5 + $0xb8] sm:$0xf] %v475
  %604 = vst [vmem:[%s5 + $0xbc] sm:$0xf] %v476
  %605 = vst [vmem:[%s5 + $0xc0] sm:$0xf] %v477
  %606 = vst [vmem:[%s5 + $0xc4] sm:$0xf] %v478
  %607 = vst [vmem:[%s5 + $0xc8] sm:$0xf] %v479
  %608 = vst [vmem:[%s5 + $0xcc] sm:$0xf] %v480
  %609 = vst [vmem:[%s5 + $0xd0] sm:$0xf] %v481
  %610 = vst [vmem:[%s5 + $0xd4] sm:$0xf] %v482
  %611 = vst [vmem:[%s5 + $0xd8] sm:$0xf] %v483
  %612 = vst [vmem:[%s5 + $0xdc] sm:$0xf] %v484
  %613 = vst [vmem:[%s5 + $0xe0] sm:$0xf] %v485
  %614 = vst [vmem:[%s5 + $0xe4] sm:$0xf] %v486
  %615 = vst [vmem:[%s5 + $0xe8] sm:$0xf] %v487
  %616 = vst [vmem:[%s5 + $0xec] sm:$0xf] %v488
  %617 = vst [vmem:[%s5 + $0xf0] sm:$0xf] %v489
  %618 = vst [vmem:[%s5 + $0xf4] sm:$0xf] %v490
  %619 = vst [vmem:[%s5 + $0xf8] sm:$0xf] %v491
  %620 = vst [vmem:[%s5 + $0xfc] sm:$0xf] %v492
  // Predicated region
  $region22: #{basic_block_forward.5} parent=0 // pred_check
    _
  $region23: #{basic_block_forward.5} parent=0 // pred_check_branch
    %622 = sbr.rel (0) target = $region25
  $region24: #{basic_block_forward.5} parent=0 // pred_region
    _
  $region25: #{basic_block_forward.5} parent=0 // pred_fallthru
    _
  // Predicated region
  $region26: #{basic_block_forward.5} parent=0 // pred_check
    _
  $region27: #{basic_block_forward.5} parent=0 // pred_check_branch
    %624 = sbr.rel (0) target = $region29
  $region28: #{basic_block_forward.5} parent=0 // pred_region
    _
  $region29: #{basic_block_forward.5} parent=0 // pred_fallthru
    _

// kernel: basic_block_forward.4
$region0: #{basic_block_forward.4}
  #allocation0 [shape = 'u32[]', space=smem, size = 0x4, offset = 0x4, fixed_abs, tag = 'smem constant byte address 0x4 - core index']
  #allocation1 [shape = 'u32[144,128]{1,0:T(1,128)}', space=vmem, size = 0x12000, scoped, tag = 'internal scratch']
  %s0 = inlined_call_operand.vmem [shape: bf16[512,128], index: 0, kind: input, shape index: {}]
  %s1 = inlined_call_operand.vmem [shape: bf16[128,128], index: 1, kind: input, shape index: {}]
  %s2 = inlined_call_operand.vmem [shape: f32[512,128], index: 2, kind: output, shape index: {0}]
  %s3 = inlined_call_operand.vmem [shape: f32[1,128], index: 3, kind: output, shape index: {1}]
  %s4 = inlined_call_operand.vmem [shape: f32[1,128], index: 4, kind: output, shape index: {2}]
  %5 = xla_tuple %s2, %s3, %s4
  %s6 = sld [smem:[#allocation0]]
  $region38: #{basic_block_forward.4} parent=0
    _
  %s8 = ssub.s32 1, %s6
  %s9 = scalar_select 0, %s8, %s6
  // Predicated region
  $region2: #{basic_block_forward.4} parent=0 // pred_check
    _
  $region3: #{basic_block_forward.4} parent=0 // pred_check_branch
    %11 = sbr.rel (0) target = $region5
  $region4: #{basic_block_forward.4} parent=0 // pred_region
    _
  $region5: #{basic_block_forward.4} parent=0 // pred_fallthru
    _
  // Predicated region
  $region6: #{basic_block_forward.4} parent=0 // pred_check
    _
  $region7: #{basic_block_forward.4} parent=0 // pred_check_branch
    %13 = sbr.rel (0) target = $region9
  $region8: #{basic_block_forward.4} parent=0 // pred_region
    _
  $region9: #{basic_block_forward.4} parent=0 // pred_fallthru
    _
  %v15 = vld [vmem:[%s0] sm:$0xf]
  %v16 = vld [vmem:[%s0 + $0x4] sm:$0xf]
  %v17 = vld [vmem:[%s0 + $0x8] sm:$0xf]
  %v18 = vld [vmem:[%s0 + $0xc] sm:$0xf]
  %v19 = vld [vmem:[%s0 + $0x10] sm:$0xf]
  %v20 = vld [vmem:[%s0 + $0x14] sm:$0xf]
  %v21 = vld [vmem:[%s0 + $0x18] sm:$0xf]
  %v22 = vld [vmem:[%s0 + $0x1c] sm:$0xf]
  %v23 = vld [vmem:[%s0 + $0x20] sm:$0xf]
  %v24 = vld [vmem:[%s0 + $0x24] sm:$0xf]
  %v25 = vld [vmem:[%s0 + $0x28] sm:$0xf]
  %v26 = vld [vmem:[%s0 + $0x2c] sm:$0xf]
  %v27 = vld [vmem:[%s0 + $0x30] sm:$0xf]
  %v28 = vld [vmem:[%s0 + $0x34] sm:$0xf]
  %v29 = vld [vmem:[%s0 + $0x38] sm:$0xf]
  %v30 = vld [vmem:[%s0 + $0x3c] sm:$0xf]
  %v31 = vld [vmem:[%s0 + $0x40] sm:$0xf]
  %v32 = vld [vmem:[%s0 + $0x44] sm:$0xf]
  %v33 = vld [vmem:[%s0 + $0x48] sm:$0xf]
  %v34 = vld [vmem:[%s0 + $0x4c] sm:$0xf]
  %v35 = vld [vmem:[%s0 + $0x50] sm:$0xf]
  %v36 = vld [vmem:[%s0 + $0x54] sm:$0xf]
  %v37 = vld [vmem:[%s0 + $0x58] sm:$0xf]
  %v38 = vld [vmem:[%s0 + $0x5c] sm:$0xf]
  %v39 = vld [vmem:[%s0 + $0x60] sm:$0xf]
  %v40 = vld [vmem:[%s0 + $0x64] sm:$0xf]
  %v41 = vld [vmem:[%s0 + $0x68] sm:$0xf]
  %v42 = vld [vmem:[%s0 + $0x6c] sm:$0xf]
  %v43 = vld [vmem:[%s0 + $0x70] sm:$0xf]
  %v44 = vld [vmem:[%s0 + $0x74] sm:$0xf]
  %v45 = vld [vmem:[%s0 + $0x78] sm:$0xf]
  %v46 = vld [vmem:[%s0 + $0x7c] sm:$0xf]
  %v47 = vld [vmem:[%s0 + $0x80] sm:$0xf]
  %v48 = vld [vmem:[%s0 + $0x84] sm:$0xf]
  %v49 = vld [vmem:[%s0 + $0x88] sm:$0xf]
  %v50 = vld [vmem:[%s0 + $0x8c] sm:$0xf]
  %v51 = vld [vmem:[%s0 + $0x90] sm:$0xf]
  %v52 = vld [vmem:[%s0 + $0x94] sm:$0xf]
  %v53 = vld [vmem:[%s0 + $0x98] sm:$0xf]
  %v54 = vld [vmem:[%s0 + $0x9c] sm:$0xf]
  %v55 = vld [vmem:[%s0 + $0xa0] sm:$0xf]
  %v56 = vld [vmem:[%s0 + $0xa4] sm:$0xf]
  %v57 = vld [vmem:[%s0 + $0xa8] sm:$0xf]
  %v58 = vld [vmem:[%s0 + $0xac] sm:$0xf]
  %v59 = vld [vmem:[%s0 + $0xb0] sm:$0xf]
  %v60 = vld [vmem:[%s0 + $0xb4] sm:$0xf]
  %v61 = vld [vmem:[%s0 + $0xb8] sm:$0xf]
  %v62 = vld [vmem:[%s0 + $0xbc] sm:$0xf]
  %v63 = vld [vmem:[%s0 + $0xc0] sm:$0xf]
  %v64 = vld [vmem:[%s0 + $0xc4] sm:$0xf]
  %v65 = vld [vmem:[%s0 + $0xc8] sm:$0xf]
  %v66 = vld [vmem:[%s0 + $0xcc] sm:$0xf]
  %v67 = vld [vmem:[%s0 + $0xd0] sm:$0xf]
  %v68 = vld [vmem:[%s0 + $0xd4] sm:$0xf]
  %v69 = vld [vmem:[%s0 + $0xd8] sm:$0xf]
  %v70 = vld [vmem:[%s0 + $0xdc] sm:$0xf]
  %v71 = vld [vmem:[%s0 + $0xe0] sm:$0xf]
  %v72 = vld [vmem:[%s0 + $0xe4] sm:$0xf]
  %v73 = vld [vmem:[%s0 + $0xe8] sm:$0xf]
  %v74 = vld [vmem:[%s0 + $0xec] sm:$0xf]
  %v75 = vld [vmem:[%s0 + $0xf0] sm:$0xf]
  %v76 = vld [vmem:[%s0 + $0xf4] sm:$0xf]
  %v77 = vld [vmem:[%s0 + $0xf8] sm:$0xf]
  %v78 = vld [vmem:[%s0 + $0xfc] sm:$0xf]
  %v79 = vld [vmem:[%s1] sm:$0xf]
  %v80 = vld [vmem:[%s1 + $0x4] sm:$0xf]
  %v81 = vld [vmem:[%s1 + $0x8] sm:$0xf]
  %v82 = vld [vmem:[%s1 + $0xc] sm:$0xf]
  %v83 = vld [vmem:[%s1 + $0x10] sm:$0xf]
  %v84 = vld [vmem:[%s1 + $0x14] sm:$0xf]
  %v85 = vld [vmem:[%s1 + $0x18] sm:$0xf]
  %v86 = vld [vmem:[%s1 + $0x1c] sm:$0xf]
  %v87 = vld [vmem:[%s1 + $0x20] sm:$0xf]
  %v88 = vld [vmem:[%s1 + $0x24] sm:$0xf]
  %v89 = vld [vmem:[%s1 + $0x28] sm:$0xf]
  %v90 = vld [vmem:[%s1 + $0x2c] sm:$0xf]
  %v91 = vld [vmem:[%s1 + $0x30] sm:$0xf]
  %v92 = vld [vmem:[%s1 + $0x34] sm:$0xf]
  %v93 = vld [vmem:[%s1 + $0x38] sm:$0xf]
  %v94 = vld [vmem:[%s1 + $0x3c] sm:$0xf]
  %v159 = vunpack.c.l.b16 %v15
  %v160 = vunpack.c.l.b16 %v16
  %v161 = vunpack.c.l.b16 %v17
  %v162 = vunpack.c.l.b16 %v18
  %v163 = vunpack.c.l.b16 %v19
  %v164 = vunpack.c.l.b16 %v20
  %v165 = vunpack.c.l.b16 %v21
  %v166 = vunpack.c.l.b16 %v22
  %v167 = vunpack.c.l.b16 %v23
  %v168 = vunpack.c.l.b16 %v24
  %v169 = vunpack.c.l.b16 %v25
  %v170 = vunpack.c.l.b16 %v26
  %v171 = vunpack.c.l.b16 %v27
  %v172 = vunpack.c.l.b16 %v28
  %v173 = vunpack.c.l.b16 %v29
  %v174 = vunpack.c.l.b16 %v30
  %v175 = vunpack.c.l.b16 %v31
  %v176 = vunpack.c.l.b16 %v32
  %v177 = vunpack.c.l.b16 %v33
  %v178 = vunpack.c.l.b16 %v34
  %v179 = vunpack.c.l.b16 %v35
  %v180 = vunpack.c.l.b16 %v36
  %v181 = vunpack.c.l.b16 %v37
  %v182 = vunpack.c.l.b16 %v38
  %v183 = vunpack.c.l.b16 %v39
  %v184 = vunpack.c.l.b16 %v40
  %v185 = vunpack.c.l.b16 %v41
  %v186 = vunpack.c.l.b16 %v42
  %v187 = vunpack.c.l.b16 %v43
  %v188 = vunpack.c.l.b16 %v44
  %v189 = vunpack.c.l.b16 %v45
  %v190 = vunpack.c.l.b16 %v46
  %v191 = vunpack.c.l.b16 %v47
  %v192 = vunpack.c.l.b16 %v48
  %v193 = vunpack.c.l.b16 %v49
  %v194 = vunpack.c.l.b16 %v50
  %v195 = vunpack.c.l.b16 %v51
  %v196 = vunpack.c.l.b16 %v52
  %v197 = vunpack.c.l.b16 %v53
  %v198 = vunpack.c.l.b16 %v54
  %v199 = vunpack.c.l.b16 %v55
  %v200 = vunpack.c.l.b16 %v56
  %v201 = vunpack.c.l.b16 %v57
  %v202 = vunpack.c.l.b16 %v58
  %v203 = vunpack.c.l.b16 %v59
  %v204 = vunpack.c.l.b16 %v60
  %v205 = vunpack.c.l.b16 %v61
  %v206 = vunpack.c.l.b16 %v62
  %v207 = vunpack.c.l.b16 %v63
  %v208 = vunpack.c.l.b16 %v64
  %v209 = vunpack.c.l.b16 %v65
  %v210 = vunpack.c.l.b16 %v66
  %v211 = vunpack.c.l.b16 %v67
  %v212 = vunpack.c.l.b16 %v68
  %v213 = vunpack.c.l.b16 %v69
  %v214 = vunpack.c.l.b16 %v70
  %v215 = vunpack.c.l.b16 %v71
  %v216 = vunpack.c.l.b16 %v72
  %v217 = vunpack.c.l.b16 %v73
  %v218 = vunpack.c.l.b16 %v74
  %v219 = vunpack.c.l.b16 %v75
  %v220 = vunpack.c.l.b16 %v76
  %v221 = vunpack.c.l.b16 %v77
  %v222 = vunpack.c.l.b16 %v78
  %v223 = vpack.c.b16 %v160, %v159
  %v224 = vpack.c.b16 %v162, %v161
  %v225 = vpack.c.b16 %v164, %v163
  %v226 = vpack.c.b16 %v166, %v165
  %v227 = vpack.c.b16 %v168, %v167
  %v228 = vpack.c.b16 %v170, %v169
  %v229 = vpack.c.b16 %v172, %v171
  %v230 = vpack.c.b16 %v174, %v173
  %v231 = vpack.c.b16 %v176, %v175
  %v232 = vpack.c.b16 %v178, %v177
  %v233 = vpack.c.b16 %v180, %v179
  %v234 = vpack.c.b16 %v182, %v181
  %v235 = vpack.c.b16 %v184, %v183
  %v236 = vpack.c.b16 %v186, %v185
  %v237 = vpack.c.b16 %v188, %v187
  %v238 = vpack.c.b16 %v190, %v189
  %v239 = vpack.c.b16 %v192, %v191
  %v240 = vpack.c.b16 %v194, %v193
  %v241 = vpack.c.b16 %v196, %v195
  %v242 = vpack.c.b16 %v198, %v197
  %v243 = vpack.c.b16 %v200, %v199
  %v244 = vpack.c.b16 %v202, %v201
  %v245 = vpack.c.b16 %v204, %v203
  %v246 = vpack.c.b16 %v206, %v205
  %v247 = vpack.c.b16 %v208, %v207
  %v248 = vpack.c.b16 %v210, %v209
  %v249 = vpack.c.b16 %v212, %v211
  %v250 = vpack.c.b16 %v214, %v213
  %v251 = vpack.c.b16 %v216, %v215
  %v252 = vpack.c.b16 %v218, %v217
  %v253 = vpack.c.b16 %v220, %v219
  %v254 = vpack.c.b16 %v222, %v221
  %v303 = vunpack.c.l.b16 %v79
  %v304 = vunpack.c.l.b16 %v80
  %v305 = vunpack.c.l.b16 %v81
  %v306 = vunpack.c.l.b16 %v82
  %v307 = vunpack.c.l.b16 %v83
  %v308 = vunpack.c.l.b16 %v84
  %v309 = vunpack.c.l.b16 %v85
  %v310 = vunpack.c.l.b16 %v86
  %v311 = vunpack.c.l.b16 %v87
  %v312 = vunpack.c.l.b16 %v88
  %v313 = vunpack.c.l.b16 %v89
  %v314 = vunpack.c.l.b16 %v90
  %v315 = vunpack.c.l.b16 %v91
  %v316 = vunpack.c.l.b16 %v92
  %v317 = vunpack.c.l.b16 %v93
  %v318 = vunpack.c.l.b16 %v94
  %v319 = vpack.c.b16 %v304, %v303
  %v320 = vpack.c.b16 %v306, %v305
  %v321 = vpack.c.b16 %v308, %v307
  %v322 = vpack.c.b16 %v310, %v309
  %v323 = vpack.c.b16 %v312, %v311
  %v324 = vpack.c.b16 %v314, %v313
  %v325 = vpack.c.b16 %v316, %v315
  %v326 = vpack.c.b16 %v318, %v317
  %335 = vmatprep.subr.bf16.mxu0 0
  %336 = vmatpush1.bf16.msra.mxu0 %v326
  %337 = vmatprep.subr.bf16.mxu0 0
  %338 = vmatpush1.bf16.msra.mxu0 %v325
  %339 = vmatprep.subr.bf16.mxu0 0
  %340 = vmatpush1.bf16.msra.mxu0 %v324
  %341 = vmatprep.subr.bf16.mxu0 0
  %342 = vmatpush1.bf16.msra.mxu0 %v323
  %343 = vmatprep.subr.bf16.mxu0 0
  %344 = vmatpush1.bf16.msra.mxu0 %v322
  %345 = vmatprep.subr.bf16.mxu0 0
  %346 = vmatpush1.bf16.msra.mxu0 %v321
  %347 = vmatprep.subr.bf16.mxu0 0
  %348 = vmatpush1.bf16.msra.mxu0 %v320
  %349 = vmatprep.subr.bf16.mxu0 0
  %350 = vmatpush1.bf16.msra.mxu0 %v319
  %351 = vmatprep.subr.bf16.mxu0 0
  %352 = vmatpush2.bf16.msra.mxu0 0
  %353 = vmatprep.subr.bf16.mxu0 0
  %354 = vmatpush2.bf16.msra.mxu0 0
  %355 = vmatprep.subr.bf16.mxu0 0
  %356 = vmatpush2.bf16.msra.mxu0 0
  %357 = vmatprep.subr.bf16.mxu0 0
  %358 = vmatpush2.bf16.msra.mxu0 0
  %359 = vmatprep.subr.bf16.mxu0 0
  %360 = vmatpush2.bf16.msra.mxu0 0
  %361 = vmatprep.subr.bf16.mxu0 0
  %362 = vmatpush2.bf16.msra.mxu0 0
  %363 = vmatprep.subr.bf16.mxu0 0
  %364 = vmatpush2.bf16.msra.mxu0 0
  %365 = vmatprep.subr.bf16.mxu0 0
  %366 = vmatpush2.bf16.msra.mxu0 0
  %367 = vmatprep.mubr.bf16.mxu0 0
  %368 = vmatmul.mubr.bf16.gmra.mxu0 %v223
  %v369 = vpop.f32.mrf.mxu0
  %v370 = vadd.f32 0.0, %v369
  %v371 = vpop.f32.mrf.mxu0
  %v372 = vpop.f32.mrf.mxu0
  %v373 = vadd.f32 0.0, %v372
  %v374 = vpop.f32.mrf.mxu0
  %375 = vmatprep.mubr.bf16.mxu0 0
  %376 = vmatmul.mubr.bf16.gmra.mxu0 %v224
  %v377 = vpop.f32.mrf.mxu0
  %v378 = vadd.f32 0.0, %v377
  %v379 = vpop.f32.mrf.mxu0
  %v380 = vpop.f32.mrf.mxu0
  %v381 = vadd.f32 0.0, %v380
  %v382 = vpop.f32.mrf.mxu0
  %383 = vmatprep.mubr.bf16.mxu0 0
  %384 = vmatmul.mubr.bf16.gmra.mxu0 %v225
  %v385 = vpop.f32.mrf.mxu0
  %v386 = vadd.f32 0.0, %v385
  %v387 = vpop.f32.mrf.mxu0
  %v388 = vpop.f32.mrf.mxu0
  %v389 = vadd.f32 0.0, %v388
  %v390 = vpop.f32.mrf.mxu0
  %391 = vmatprep.mubr.bf16.mxu0 0
  %392 = vmatmul.mubr.bf16.gmra.mxu0 %v226
  %v393 = vpop.f32.mrf.mxu0
  %v394 = vadd.f32 0.0, %v393
  %v395 = vpop.f32.mrf.mxu0
  %v396 = vpop.f32.mrf.mxu0
  %v397 = vadd.f32 0.0, %v396
  %v398 = vpop.f32.mrf.mxu0
  %399 = vmatprep.mubr.bf16.mxu0 0
  %400 = vmatmul.mubr.bf16.gmra.mxu0 %v227
  %v401 = vpop.f32.mrf.mxu0
  %v402 = vadd.f32 0.0, %v401
  %v403 = vpop.f32.mrf.mxu0
  %v404 = vpop.f32.mrf.mxu0
  %v405 = vadd.f32 0.0, %v404
  %v406 = vpop.f32.mrf.mxu0
  %407 = vmatprep.mubr.bf16.mxu0 0
  %408 = vmatmul.mubr.bf16.gmra.mxu0 %v228
  %v409 = vpop.f32.mrf.mxu0
  %v410 = vadd.f32 0.0, %v409
  %v411 = vpop.f32.mrf.mxu0
  %v412 = vpop.f32.mrf.mxu0
  %v413 = vadd.f32 0.0, %v412
  %v414 = vpop.f32.mrf.mxu0
  %415 = vmatprep.mubr.bf16.mxu0 0
  %416 = vmatmul.mubr.bf16.gmra.mxu0 %v229
  %v417 = vpop.f32.mrf.mxu0
  %v418 = vadd.f32 0.0, %v417
  %v419 = vpop.f32.mrf.mxu0
  %v420 = vpop.f32.mrf.mxu0
  %v421 = vadd.f32 0.0, %v420
  %v422 = vpop.f32.mrf.mxu0
  %423 = vmatprep.mubr.bf16.mxu0 0
  %424 = vmatmul.mubr.bf16.gmra.mxu0 %v230
  %v425 = vpop.f32.mrf.mxu0
  %v426 = vadd.f32 0.0, %v425
  %v427 = vpop.f32.mrf.mxu0
  %v428 = vpop.f32.mrf.mxu0
  %v429 = vadd.f32 0.0, %v428
  %v430 = vpop.f32.mrf.mxu0
  %431 = vmatprep.mubr.bf16.mxu0 0
  %432 = vmatmul.mubr.bf16.gmra.mxu0 %v231
  %v433 = vpop.f32.mrf.mxu0
  %v434 = vadd.f32 0.0, %v433
  %v435 = vpop.f32.mrf.mxu0
  %v436 = vpop.f32.mrf.mxu0
  %v437 = vadd.f32 0.0, %v436
  %v438 = vpop.f32.mrf.mxu0
  %439 = vmatprep.mubr.bf16.mxu0 0
  %440 = vmatmul.mubr.bf16.gmra.mxu0 %v232
  %v441 = vpop.f32.mrf.mxu0
  %v442 = vadd.f32 0.0, %v441
  %v443 = vpop.f32.mrf.mxu0
  %v444 = vpop.f32.mrf.mxu0
  %v445 = vadd.f32 0.0, %v444
  %v446 = vpop.f32.mrf.mxu0
  %447 = vmatprep.mubr.bf16.mxu0 0
  %448 = vmatmul.mubr.bf16.gmra.mxu0 %v233
  %v449 = vpop.f32.mrf.mxu0
  %v450 = vadd.f32 0.0, %v449
  %v451 = vpop.f32.mrf.mxu0
  %v452 = vpop.f32.mrf.mxu0
  %v453 = vadd.f32 0.0, %v452
  %v454 = vpop.f32.mrf.mxu0
  %455 = vmatprep.mubr.bf16.mxu0 0
  %456 = vmatmul.mubr.bf16.gmra.mxu0 %v234
  %v457 = vpop.f32.mrf.mxu0
  %v458 = vadd.f32 0.0, %v457
  %v459 = vpop.f32.mrf.mxu0
  %v460 = vpop.f32.mrf.mxu0
  %v461 = vadd.f32 0.0, %v460
  %v462 = vpop.f32.mrf.mxu0
  %463 = vmatprep.mubr.bf16.mxu0 0
  %464 = vmatmul.mubr.bf16.gmra.mxu0 %v235
  %v465 = vpop.f32.mrf.mxu0
  %v466 = vadd.f32 0.0, %v465
  %v467 = vpop.f32.mrf.mxu0
  %v468 = vpop.f32.mrf.mxu0
  %v469 = vadd.f32 0.0, %v468
  %v470 = vpop.f32.mrf.mxu0
  %471 = vmatprep.mubr.bf16.mxu0 0
  %472 = vmatmul.mubr.bf16.gmra.mxu0 %v236
  %v473 = vpop.f32.mrf.mxu0
  %v474 = vadd.f32 0.0, %v473
  %v475 = vpop.f32.mrf.mxu0
  %v476 = vpop.f32.mrf.mxu0
  %v477 = vadd.f32 0.0, %v476
  %v478 = vpop.f32.mrf.mxu0
  %479 = vmatprep.mubr.bf16.mxu0 0
  %480 = vmatmul.mubr.bf16.gmra.mxu0 %v237
  %v481 = vpop.f32.mrf.mxu0
  %v482 = vadd.f32 0.0, %v481
  %v483 = vpop.f32.mrf.mxu0
  %v484 = vpop.f32.mrf.mxu0
  %v485 = vadd.f32 0.0, %v484
  %v486 = vpop.f32.mrf.mxu0
  %487 = vmatprep.mubr.bf16.mxu0 0
  %488 = vmatmul.mubr.bf16.gmra.mxu0 %v238
  %v489 = vpop.f32.mrf.mxu0
  %v490 = vadd.f32 0.0, %v489
  %v491 = vpop.f32.mrf.mxu0
  %v492 = vpop.f32.mrf.mxu0
  %v493 = vadd.f32 0.0, %v492
  %v494 = vpop.f32.mrf.mxu0
  %495 = vmatprep.mubr.bf16.mxu0 0
  %496 = vmatmul.mubr.bf16.gmra.mxu0 %v239
  %v497 = vpop.f32.mrf.mxu0
  %v498 = vadd.f32 0.0, %v497
  %v499 = vpop.f32.mrf.mxu0
  %v500 = vpop.f32.mrf.mxu0
  %v501 = vadd.f32 0.0, %v500
  %v502 = vpop.f32.mrf.mxu0
  %503 = vmatprep.mubr.bf16.mxu0 0
  %504 = vmatmul.mubr.bf16.gmra.mxu0 %v240
  %v505 = vpop.f32.mrf.mxu0
  %v506 = vadd.f32 0.0, %v505
  %v507 = vpop.f32.mrf.mxu0
  %v508 = vpop.f32.mrf.mxu0
  %v509 = vadd.f32 0.0, %v508
  %v510 = vpop.f32.mrf.mxu0
  %511 = vmatprep.mubr.bf16.mxu0 0
  %512 = vmatmul.mubr.bf16.gmra.mxu0 %v241
  %v513 = vpop.f32.mrf.mxu0
  %v514 = vadd.f32 0.0, %v513
  %v515 = vpop.f32.mrf.mxu0
  %v516 = vpop.f32.mrf.mxu0
  %v517 = vadd.f32 0.0, %v516
  %v518 = vpop.f32.mrf.mxu0
  %519 = vmatprep.mubr.bf16.mxu0 0
  %520 = vmatmul.mubr.bf16.gmra.mxu0 %v242
  %v521 = vpop.f32.mrf.mxu0
  %v522 = vadd.f32 0.0, %v521
  %v523 = vpop.f32.mrf.mxu0
  %v524 = vpop.f32.mrf.mxu0
  %v525 = vadd.f32 0.0, %v524
  %v526 = vpop.f32.mrf.mxu0
  %527 = vmatprep.mubr.bf16.mxu0 0
  %528 = vmatmul.mubr.bf16.gmra.mxu0 %v243
  %v529 = vpop.f32.mrf.mxu0
  %v530 = vadd.f32 0.0, %v529
  %v531 = vpop.f32.mrf.mxu0
  %v532 = vpop.f32.mrf.mxu0
  %v533 = vadd.f32 0.0, %v532
  %v534 = vpop.f32.mrf.mxu0
  %535 = vmatprep.mubr.bf16.mxu0 0
  %536 = vmatmul.mubr.bf16.gmra.mxu0 %v244
  %v537 = vpop.f32.mrf.mxu0
  %v538 = vadd.f32 0.0, %v537
  %v539 = vpop.f32.mrf.mxu0
  %v540 = vpop.f32.mrf.mxu0
  %v541 = vadd.f32 0.0, %v540
  %v542 = vpop.f32.mrf.mxu0
  %543 = vmatprep.mubr.bf16.mxu0 0
  %544 = vmatmul.mubr.bf16.gmra.mxu0 %v245
  %v545 = vpop.f32.mrf.mxu0
  %v546 = vadd.f32 0.0, %v545
  %v547 = vpop.f32.mrf.mxu0
  %v548 = vpop.f32.mrf.mxu0
  %v549 = vadd.f32 0.0, %v548
  %v550 = vpop.f32.mrf.mxu0
  %551 = vmatprep.mubr.bf16.mxu0 0
  %552 = vmatmul.mubr.bf16.gmra.mxu0 %v246
  %v553 = vpop.f32.mrf.mxu0
  %v554 = vadd.f32 0.0, %v553
  %v555 = vpop.f32.mrf.mxu0
  %v556 = vpop.f32.mrf.mxu0
  %v557 = vadd.f32 0.0, %v556
  %v558 = vpop.f32.mrf.mxu0
  %559 = vmatprep.mubr.bf16.mxu0 0
  %560 = vmatmul.mubr.bf16.gmra.mxu0 %v247
  %v561 = vpop.f32.mrf.mxu0
  %v562 = vadd.f32 0.0, %v561
  %v563 = vpop.f32.mrf.mxu0
  %v564 = vpop.f32.mrf.mxu0
  %v565 = vadd.f32 0.0, %v564
  %v566 = vpop.f32.mrf.mxu0
  %567 = vmatprep.mubr.bf16.mxu0 0
  %568 = vmatmul.mubr.bf16.gmra.mxu0 %v248
  %v569 = vpop.f32.mrf.mxu0
  %v570 = vadd.f32 0.0, %v569
  %v571 = vpop.f32.mrf.mxu0
  %v572 = vpop.f32.mrf.mxu0
  %v573 = vadd.f32 0.0, %v572
  %v574 = vpop.f32.mrf.mxu0
  %575 = vmatprep.mubr.bf16.mxu0 0
  %576 = vmatmul.mubr.bf16.gmra.mxu0 %v249
  %v577 = vpop.f32.mrf.mxu0
  %v578 = vadd.f32 0.0, %v577
  %v579 = vpop.f32.mrf.mxu0
  %v580 = vpop.f32.mrf.mxu0
  %v581 = vadd.f32 0.0, %v580
  %v582 = vpop.f32.mrf.mxu0
  %583 = vmatprep.mubr.bf16.mxu0 0
  %584 = vmatmul.mubr.bf16.gmra.mxu0 %v250
  %v585 = vpop.f32.mrf.mxu0
  %v586 = vadd.f32 0.0, %v585
  %v587 = vpop.f32.mrf.mxu0
  %v588 = vpop.f32.mrf.mxu0
  %v589 = vadd.f32 0.0, %v588
  %v590 = vpop.f32.mrf.mxu0
  %591 = vmatprep.mubr.bf16.mxu0 0
  %592 = vmatmul.mubr.bf16.gmra.mxu0 %v251
  %v593 = vpop.f32.mrf.mxu0
  %v594 = vadd.f32 0.0, %v593
  %v595 = vpop.f32.mrf.mxu0
  %v596 = vpop.f32.mrf.mxu0
  %v597 = vadd.f32 0.0, %v596
  %v598 = vpop.f32.mrf.mxu0
  %599 = vmatprep.mubr.bf16.mxu0 0
  %600 = vmatmul.mubr.bf16.gmra.mxu0 %v252
  %v601 = vpop.f32.mrf.mxu0
  %v602 = vadd.f32 0.0, %v601
  %v603 = vpop.f32.mrf.mxu0
  %v604 = vpop.f32.mrf.mxu0
  %v605 = vadd.f32 0.0, %v604
  %v606 = vpop.f32.mrf.mxu0
  %607 = vmatprep.mubr.bf16.mxu0 0
  %608 = vmatmul.mubr.bf16.gmra.mxu0 %v253
  %v609 = vpop.f32.mrf.mxu0
  %v610 = vadd.f32 0.0, %v609
  %v611 = vpop.f32.mrf.mxu0
  %v612 = vpop.f32.mrf.mxu0
  %v613 = vadd.f32 0.0, %v612
  %v614 = vpop.f32.mrf.mxu0
  %615 = vmatprep.mubr.bf16.mxu0 0
  %616 = vmatmul.mubr.bf16.gmra.mxu0 %v254
  %v617 = vpop.f32.mrf.mxu0
  %v618 = vadd.f32 0.0, %v617
  %v619 = vpop.f32.mrf.mxu0
  %v620 = vpop.f32.mrf.mxu0
  %v621 = vadd.f32 0.0, %v620
  %v622 = vpop.f32.mrf.mxu0
  %623 = vdwg.mxu0
  %624 = vst [vmem:[%s2] sm:$0xff] %v370
  %625 = vst [vmem:[%s2 + $0x8] sm:$0xff] %v373
  %626 = vst [vmem:[%s2 + $0x10] sm:$0xff] %v378
  %627 = vst [vmem:[%s2 + $0x18] sm:$0xff] %v381
  %628 = vst [vmem:[%s2 + $0x20] sm:$0xff] %v386
  %629 = vst [vmem:[%s2 + $0x28] sm:$0xff] %v389
  %630 = vst [vmem:[%s2 + $0x30] sm:$0xff] %v394
  %631 = vst [vmem:[%s2 + $0x38] sm:$0xff] %v397
  %632 = vst [vmem:[%s2 + $0x40] sm:$0xff] %v402
  %633 = vst [vmem:[%s2 + $0x48] sm:$0xff] %v405
  %634 = vst [vmem:[%s2 + $0x50] sm:$0xff] %v410
  %635 = vst [vmem:[%s2 + $0x58] sm:$0xff] %v413
  %636 = vst [vmem:[%s2 + $0x60] sm:$0xff] %v418
  %637 = vst [vmem:[%s2 + $0x68] sm:$0xff] %v421
  %638 = vst [vmem:[%s2 + $0x70] sm:$0xff] %v426
  %639 = vst [vmem:[%s2 + $0x78] sm:$0xff] %v429
  %640 = vst [vmem:[%s2 + $0x80] sm:$0xff] %v434
  %641 = vst [vmem:[%s2 + $0x88] sm:$0xff] %v437
  %642 = vst [vmem:[%s2 + $0x90] sm:$0xff] %v442
  %643 = vst [vmem:[%s2 + $0x98] sm:$0xff] %v445
  %644 = vst [vmem:[%s2 + $0xa0] sm:$0xff] %v450
  %645 = vst [vmem:[%s2 + $0xa8] sm:$0xff] %v453
  %646 = vst [vmem:[%s2 + $0xb0] sm:$0xff] %v458
  %647 = vst [vmem:[%s2 + $0xb8] sm:$0xff] %v461
  %648 = vst [vmem:[%s2 + $0xc0] sm:$0xff] %v466
  %649 = vst [vmem:[%s2 + $0xc8] sm:$0xff] %v469
  %650 = vst [vmem:[%s2 + $0xd0] sm:$0xff] %v474
  %651 = vst [vmem:[%s2 + $0xd8] sm:$0xff] %v477
  %652 = vst [vmem:[%s2 + $0xe0] sm:$0xff] %v482
  %653 = vst [vmem:[%s2 + $0xe8] sm:$0xff] %v485
  %654 = vst [vmem:[%s2 + $0xf0] sm:$0xff] %v490
  %655 = vst [vmem:[%s2 + $0xf8] sm:$0xff] %v493
  %656 = vst [vmem:[%s2 + $0x100] sm:$0xff] %v498
  %657 = vst [vmem:[%s2 + $0x108] sm:$0xff] %v501
  %658 = vst [vmem:[%s2 + $0x110] sm:$0xff] %v506
  %659 = vst [vmem:[%s2 + $0x118] sm:$0xff] %v509
  %660 = vst [vmem:[%s2 + $0x120] sm:$0xff] %v514
  %661 = vst [vmem:[%s2 + $0x128] sm:$0xff] %v517
  %662 = vst [vmem:[%s2 + $0x130] sm:$0xff] %v522
  %663 = vst [vmem:[%s2 + $0x138] sm:$0xff] %v525
  %664 = vst [vmem:[%s2 + $0x140] sm:$0xff] %v530
  %665 = vst [vmem:[%s2 + $0x148] sm:$0xff] %v533
  %666 = vst [vmem:[%s2 + $0x150] sm:$0xff] %v538
  %667 = vst [vmem:[%s2 + $0x158] sm:$0xff] %v541
  %668 = vst [vmem:[%s2 + $0x160] sm:$0xff] %v546
  %669 = vst [vmem:[%s2 + $0x168] sm:$0xff] %v549
  %670 = vst [vmem:[%s2 + $0x170] sm:$0xff] %v554
  %671 = vst [vmem:[%s2 + $0x178] sm:$0xff] %v557
  %672 = vst [vmem:[%s2 + $0x180] sm:$0xff] %v562
  %673 = vst [vmem:[%s2 + $0x188] sm:$0xff] %v565
  %674 = vst [vmem:[%s2 + $0x190] sm:$0xff] %v570
  %675 = vst [vmem:[%s2 + $0x198] sm:$0xff] %v573
  %676 = vst [vmem:[%s2 + $0x1a0] sm:$0xff] %v578
  %677 = vst [vmem:[%s2 + $0x1a8] sm:$0xff] %v581
  %678 = vst [vmem:[%s2 + $0x1b0] sm:$0xff] %v586
  %679 = vst [vmem:[%s2 + $0x1b8] sm:$0xff] %v589
  %680 = vst [vmem:[%s2 + $0x1c0] sm:$0xff] %v594
  %681 = vst [vmem:[%s2 + $0x1c8] sm:$0xff] %v597
  %682 = vst [vmem:[%s2 + $0x1d0] sm:$0xff] %v602
  %683 = vst [vmem:[%s2 + $0x1d8] sm:$0xff] %v605
  %684 = vst [vmem:[%s2 + $0x1e0] sm:$0xff] %v610
  %685 = vst [vmem:[%s2 + $0x1e8] sm:$0xff] %v613
  %686 = vst [vmem:[%s2 + $0x1f0] sm:$0xff] %v618
  %687 = vst [vmem:[%s2 + $0x1f8] sm:$0xff] %v621
  %p688 = scmp.eq.s32.totalorder 0, 0
  // Predicated region
  $region10: #{basic_block_forward.4} parent=0 // pred_check
    %p689 = pneg %p688
  $region11: #{basic_block_forward.4} parent=0 // pred_check_branch
    %691 = sbr.rel (%p689) target = $region13
  $region12: #{basic_block_forward.4} parent=0 // pred_region
    %692 = vst [vmem:[%s3] sm:$0x1] 0.0
    %693 = vst [vmem:[%s4] sm:$0x1] 0.0
  $region13: #{basic_block_forward.4} parent=0 // pred_fallthru
    _
  %v694 = vld [vmem:[%s3] sm:$0x1]
  %v695 = vadd.f32 %v370, %v373
  %v696 = vadd.f32 %v695, %v378
  %v697 = vadd.f32 %v696, %v381
  %v698 = vadd.f32 %v697, %v386
  %v699 = vadd.f32 %v698, %v389
  %v700 = vadd.f32 %v699, %v394
  %v701 = vadd.f32 %v700, %v397
  %v702 = vadd.f32 %v701, %v402
  %v703 = vadd.f32 %v702, %v405
  %v704 = vadd.f32 %v703, %v410
  %v705 = vadd.f32 %v704, %v413
  %v706 = vadd.f32 %v705, %v418
  %v707 = vadd.f32 %v706, %v421
  %v708 = vadd.f32 %v707, %v426
  %v709 = vadd.f32 %v708, %v429
  %v710 = vadd.f32 %v709, %v434
  %v711 = vadd.f32 %v710, %v437
  %v712 = vadd.f32 %v711, %v442
  %v713 = vadd.f32 %v712, %v445
  %v714 = vadd.f32 %v713, %v450
  %v715 = vadd.f32 %v714, %v453
  %v716 = vadd.f32 %v715, %v458
  %v717 = vadd.f32 %v716, %v461
  %v718 = vadd.f32 %v717, %v466
  %v719 = vadd.f32 %v718, %v469
  %v720 = vadd.f32 %v719, %v474
  %v721 = vadd.f32 %v720, %v477
  %v722 = vadd.f32 %v721, %v482
  %v723 = vadd.f32 %v722, %v485
  %v724 = vadd.f32 %v723, %v490
  %v725 = vadd.f32 %v724, %v493
  %v726 = vadd.f32 %v725, %v498
  %v727 = vadd.f32 %v726, %v501
  %v728 = vadd.f32 %v727, %v506
  %v729 = vadd.f32 %v728, %v509
  %v730 = vadd.f32 %v729, %v514
  %v731 = vadd.f32 %v730, %v517
  %v732 = vadd.f32 %v731, %v522
  %v733 = vadd.f32 %v732, %v525
  %v734 = vadd.f32 %v733, %v530
  %v735 = vadd.f32 %v734, %v533
  %v736 = vadd.f32 %v735, %v538
  %v737 = vadd.f32 %v736, %v541
  %v738 = vadd.f32 %v737, %v546
  %v739 = vadd.f32 %v738, %v549
  %v740 = vadd.f32 %v739, %v554
  %v741 = vadd.f32 %v740, %v557
  %v742 = vadd.f32 %v741, %v562
  %v743 = vadd.f32 %v742, %v565
  %v744 = vadd.f32 %v743, %v570
  %v745 = vadd.f32 %v744, %v573
  %v746 = vadd.f32 %v745, %v578
  %v747 = vadd.f32 %v746, %v581
  %v748 = vadd.f32 %v747, %v586
  %v749 = vadd.f32 %v748, %v589
  %v750 = vadd.f32 %v749, %v594
  %v751 = vadd.f32 %v750, %v597
  %v752 = vadd.f32 %v751, %v602
  %v753 = vadd.f32 %v752, %v605
  %v754 = vadd.f32 %v753, %v610
  %v755 = vadd.f32 %v754, %v613
  %v756 = vadd.f32 %v755, %v618
  %v757 = vadd.f32 %v756, %v621
  %v758 = vrot.slane %v757, 4
  %v759 = vadd.f32 %v757, %v758
  %v760 = vrot.slane %v759, 2
  %v761 = vadd.f32 %v759, %v760
  %v762 = vrot.slane %v761, 1
  %v763 = vadd.f32 %v761, %v762
  %v764 = vadd.f32 %v694, %v763
  %765 = vst [vmem:[%s3] sm:$0x1] %v764
  %v766 = vld [vmem:[%s4] sm:$0x1]
  %v767 = vmul.f32 %v370, %v370
  %v768 = vmul.f32 %v373, %v373
  %v769 = vmul.f32 %v378, %v378
  %v770 = vmul.f32 %v381, %v381
  %v771 = vmul.f32 %v386, %v386
  %v772 = vmul.f32 %v389, %v389
  %v773 = vmul.f32 %v394, %v394
  %v774 = vmul.f32 %v397, %v397
  %v775 = vmul.f32 %v402, %v402
  %v776 = vmul.f32 %v405, %v405
  %v777 = vmul.f32 %v410, %v410
  %v778 = vmul.f32 %v413, %v413
  %v779 = vmul.f32 %v418, %v418
  %v780 = vmul.f32 %v421, %v421
  %v781 = vmul.f32 %v426, %v426
  %v782 = vmul.f32 %v429, %v429
  %v783 = vmul.f32 %v434, %v434
  %v784 = vmul.f32 %v437, %v437
  %v785 = vmul.f32 %v442, %v442
  %v786 = vmul.f32 %v445, %v445
  %v787 = vmul.f32 %v450, %v450
  %v788 = vmul.f32 %v453, %v453
  %v789 = vmul.f32 %v458, %v458
  %v790 = vmul.f32 %v461, %v461
  %v791 = vmul.f32 %v466, %v466
  %v792 = vmul.f32 %v469, %v469
  %v793 = vmul.f32 %v474, %v474
  %v794 = vmul.f32 %v477, %v477
  %v795 = vmul.f32 %v482, %v482
  %v796 = vmul.f32 %v485, %v485
  %v797 = vmul.f32 %v490, %v490
  %v798 = vmul.f32 %v493, %v493
  %v799 = vmul.f32 %v498, %v498
  %v800 = vmul.f32 %v501, %v501
  %v801 = vmul.f32 %v506, %v506
  %v802 = vmul.f32 %v509, %v509
  %v803 = vmul.f32 %v514, %v514
  %v804 = vmul.f32 %v517, %v517
  %v805 = vmul.f32 %v522, %v522
  %v806 = vmul.f32 %v525, %v525
  %v807 = vmul.f32 %v530, %v530
  %v808 = vmul.f32 %v533, %v533
  %v809 = vmul.f32 %v538, %v538
  %v810 = vmul.f32 %v541, %v541
  %v811 = vmul.f32 %v546, %v546
  %v812 = vmul.f32 %v549, %v549
  %v813 = vmul.f32 %v554, %v554
  %v814 = vmul.f32 %v557, %v557
  %v815 = vmul.f32 %v562, %v562
  %v816 = vmul.f32 %v565, %v565
  %v817 = vmul.f32 %v570, %v570
  %v818 = vmul.f32 %v573, %v573
  %v819 = vmul.f32 %v578, %v578
  %v820 = vmul.f32 %v581, %v581
  %v821 = vmul.f32 %v586, %v586
  %v822 = vmul.f32 %v589, %v589
  %v823 = vmul.f32 %v594, %v594
  %v824 = vmul.f32 %v597, %v597
  %v825 = vmul.f32 %v602, %v602
  %v826 = vmul.f32 %v605, %v605
  %v827 = vmul.f32 %v610, %v610
  %v828 = vmul.f32 %v613, %v613
  %v829 = vmul.f32 %v618, %v618
  %v830 = vmul.f32 %v621, %v621
  %v831 = vadd.f32 %v767, %v768
  %v832 = vadd.f32 %v831, %v769
  %v833 = vadd.f32 %v832, %v770
  %v834 = vadd.f32 %v833, %v771
  %v835 = vadd.f32 %v834, %v772
  %v836 = vadd.f32 %v835, %v773
  %v837 = vadd.f32 %v836, %v774
  %v838 = vadd.f32 %v837, %v775
  %v839 = vadd.f32 %v838, %v776
  %v840 = vadd.f32 %v839, %v777
  %v841 = vadd.f32 %v840, %v778
  %v842 = vadd.f32 %v841, %v779
  %v843 = vadd.f32 %v842, %v780
  %v844 = vadd.f32 %v843, %v781
  %v845 = vadd.f32 %v844, %v782
  %v846 = vadd.f32 %v845, %v783
  %v847 = vadd.f32 %v846, %v784
  %v848 = vadd.f32 %v847, %v785
  %v849 = vadd.f32 %v848, %v786
  %v850 = vadd.f32 %v849, %v787
  %v851 = vadd.f32 %v850, %v788
  %v852 = vadd.f32 %v851, %v789
  %v853 = vadd.f32 %v852, %v790
  %v854 = vadd.f32 %v853, %v791
  %v855 = vadd.f32 %v854, %v792
  %v856 = vadd.f32 %v855, %v793
  %v857 = vadd.f32 %v856, %v794
  %v858 = vadd.f32 %v857, %v795
  %v859 = vadd.f32 %v858, %v796
  %v860 = vadd.f32 %v859, %v797
  %v861 = vadd.f32 %v860, %v798
  %v862 = vadd.f32 %v861, %v799
  %v863 = vadd.f32 %v862, %v800
  %v864 = vadd.f32 %v863, %v801
  %v865 = vadd.f32 %v864, %v802
  %v866 = vadd.f32 %v865, %v803
  %v867 = vadd.f32 %v866, %v804
  %v868 = vadd.f32 %v867, %v805
  %v869 = vadd.f32 %v868, %v806
  %v870 = vadd.f32 %v869, %v807
  %v871 = vadd.f32 %v870, %v808
  %v872 = vadd.f32 %v871, %v809
  %v873 = vadd.f32 %v872, %v810
  %v874 = vadd.f32 %v873, %v811
  %v875 = vadd.f32 %v874, %v812
  %v876 = vadd.f32 %v875, %v813
  %v877 = vadd.f32 %v876, %v814
  %v878 = vadd.f32 %v877, %v815
  %v879 = vadd.f32 %v878, %v816
  %v880 = vadd.f32 %v879, %v817
  %v881 = vadd.f32 %v880, %v818
  %v882 = vadd.f32 %v881, %v819
  %v883 = vadd.f32 %v882, %v820
  %v884 = vadd.f32 %v883, %v821
  %v885 = vadd.f32 %v884, %v822
  %v886 = vadd.f32 %v885, %v823
  %v887 = vadd.f32 %v886, %v824
  %v888 = vadd.f32 %v887, %v825
  %v889 = vadd.f32 %v888, %v826
  %v890 = vadd.f32 %v889, %v827
  %v891 = vadd.f32 %v890, %v828
  %v892 = vadd.f32 %v891, %v829
  %v893 = vadd.f32 %v892, %v830
  %v894 = vrot.slane %v893, 4
  %v895 = vadd.f32 %v893, %v894
  %v896 = vrot.slane %v895, 2
  %v897 = vadd.f32 %v895, %v896
  %v898 = vrot.slane %v897, 1
  %v899 = vadd.f32 %v897, %v898
  %v900 = vadd.f32 %v766, %v899
  %901 = vst [vmem:[%s4] sm:$0x1] %v900
  // Predicated region
  $region14: #{basic_block_forward.4} parent=0 // pred_check
    _
  $region15: #{basic_block_forward.4} parent=0 // pred_check_branch
    %903 = sbr.rel (0) target = $region17
  $region16: #{basic_block_forward.4} parent=0 // pred_region
    _
  $region17: #{basic_block_forward.4} parent=0 // pred_fallthru
    _
  // Predicated region
  $region18: #{basic_block_forward.4} parent=0 // pred_check
    _
  $region19: #{basic_block_forward.4} parent=0 // pred_check_branch
    %905 = sbr.rel (0) target = $region21
  $region20: #{basic_block_forward.4} parent=0 // pred_region
    _
  $region21: #{basic_block_forward.4} parent=0 // pred_fallthru
    _
  // Predicated region
  $region22: #{basic_block_forward.4} parent=0 // pred_check
    _
  $region23: #{basic_block_forward.4} parent=0 // pred_check_branch
    %907 = sbr.rel (0) target = $region25
  $region24: #{basic_block_forward.4} parent=0 // pred_region
    _
  $region25: #{basic_block_forward.4} parent=0 // pred_fallthru
    _
  // Predicated region
  $region26: #{basic_block_forward.4} parent=0 // pred_check
    _
  $region27: #{basic_block_forward.4} parent=0 // pred_check_branch
    %909 = sbr.rel (0) target = $region29
  $region28: #{basic_block_forward.4} parent=0 // pred_region
    _
  $region29: #{basic_block_forward.4} parent=0 // pred_fallthru
    _
  // Predicated region
  $region30: #{basic_block_forward.4} parent=0 // pred_check
    _
  $region31: #{basic_block_forward.4} parent=0 // pred_check_branch
    %911 = sbr.rel (0) target = $region33
  $region32: #{basic_block_forward.4} parent=0 // pred_region
    _
  $region33: #{basic_block_forward.4} parent=0 // pred_fallthru
    _
  // Predicated region
  $region34: #{basic_block_forward.4} parent=0 // pred_check
    _
  $region35: #{basic_block_forward.4} parent=0 // pred_check_branch
    %913 = sbr.rel (0) target = $region37
  $region36: #{basic_block_forward.4} parent=0 // pred_region
    _
  $region37: #{basic_block_forward.4} parent=0 // pred_fallthru
    _

// kernel: basic_block_forward.7
$region0: #{basic_block_forward.7}
  #allocation0 [shape = 'u32[]', space=smem, size = 0x4, offset = 0x4, fixed_abs, tag = 'smem constant byte address 0x4 - core index']
  #allocation1 [shape = 'u32[144,128]{1,0:T(1,128)}', space=vmem, size = 0x12000, scoped, tag = 'internal scratch']
  %s0 = inlined_call_operand.vmem [shape: f32[512,128], index: 0, kind: input, shape index: {}]
  %s1 = inlined_call_operand.vmem [shape: f32[1,128], index: 1, kind: input, shape index: {}]
  %s2 = inlined_call_operand.vmem [shape: f32[1,128], index: 2, kind: input, shape index: {}]
  %s3 = inlined_call_operand.vmem [shape: f32[1,128], index: 3, kind: input, shape index: {}]
  %s4 = inlined_call_operand.vmem [shape: f32[1,128], index: 4, kind: input, shape index: {}]
  %s5 = inlined_call_operand.vmem [shape: bf16[512,128], index: 5, kind: input, shape index: {}]
  %s6 = inlined_call_operand.vmem [shape: bf16[128,128], index: 6, kind: input, shape index: {}]
  %s7 = inlined_call_operand.vmem [shape: f32[1,128], index: 7, kind: input, shape index: {}]
  %s8 = inlined_call_operand.vmem [shape: f32[512,128], index: 8, kind: output, shape index: {}]
  %s9 = sld [smem:[#allocation0]]
  $region42: #{basic_block_forward.7} parent=0
    _
  %s11 = ssub.s32 1, %s9
  %s12 = scalar_select 0, %s11, %s9
  // Predicated region
  $region2: #{basic_block_forward.7} parent=0 // pred_check
    _
  $region3: #{basic_block_forward.7} parent=0 // pred_check_branch
    %14 = sbr.rel (0) target = $region5
  $region4: #{basic_block_forward.7} parent=0 // pred_region
    _
  $region5: #{basic_block_forward.7} parent=0 // pred_fallthru
    _
  // Predicated region
  $region6: #{basic_block_forward.7} parent=0 // pred_check
    _
  $region7: #{basic_block_forward.7} parent=0 // pred_check_branch
    %16 = sbr.rel (0) target = $region9
  $region8: #{basic_block_forward.7} parent=0 // pred_region
    _
  $region9: #{basic_block_forward.7} parent=0 // pred_fallthru
    _
  // Predicated region
  $region10: #{basic_block_forward.7} parent=0 // pred_check
    _
  $region11: #{basic_block_forward.7} parent=0 // pred_check_branch
    %18 = sbr.rel (0) target = $region13
  $region12: #{basic_block_forward.7} parent=0 // pred_region
    _
  $region13: #{basic_block_forward.7} parent=0 // pred_fallthru
    _
  // Predicated region
  $region14: #{basic_block_forward.7} parent=0 // pred_check
    _
  $region15: #{basic_block_forward.7} parent=0 // pred_check_branch
    %20 = sbr.rel (0) target = $region17
  $region16: #{basic_block_forward.7} parent=0 // pred_region
    _
  $region17: #{basic_block_forward.7} parent=0 // pred_fallthru
    _
  // Predicated region
  $region18: #{basic_block_forward.7} parent=0 // pred_check
    _
  $region19: #{basic_block_forward.7} parent=0 // pred_check_branch
    %22 = sbr.rel (0) target = $region21
  $region20: #{basic_block_forward.7} parent=0 // pred_region
    _
  $region21: #{basic_block_forward.7} parent=0 // pred_fallthru
    _
  // Predicated region
  $region22: #{basic_block_forward.7} parent=0 // pred_check
    _
  $region23: #{basic_block_forward.7} parent=0 // pred_check_branch
    %24 = sbr.rel (0) target = $region25
  $region24: #{basic_block_forward.7} parent=0 // pred_region
    _
  $region25: #{basic_block_forward.7} parent=0 // pred_fallthru
    _
  // Predicated region
  $region26: #{basic_block_forward.7} parent=0 // pred_check
    _
  $region27: #{basic_block_forward.7} parent=0 // pred_check_branch
    %26 = sbr.rel (0) target = $region29
  $region28: #{basic_block_forward.7} parent=0 // pred_region
    _
  $region29: #{basic_block_forward.7} parent=0 // pred_fallthru
    _
  // Predicated region
  $region30: #{basic_block_forward.7} parent=0 // pred_check
    _
  $region31: #{basic_block_forward.7} parent=0 // pred_check_branch
    %28 = sbr.rel (0) target = $region33
  $region32: #{basic_block_forward.7} parent=0 // pred_region
    _
  $region33: #{basic_block_forward.7} parent=0 // pred_fallthru
    _
  %v30 = vld [vmem:[%s1] sm:$0x1]
  %v31 = vmul.f32 %v30, 0.001953125
  %v32 = vld [vmem:[%s2] sm:$0x1]
  %v33 = vmul.f32 %v32, 0.001953125
  %v34 = vmul.f32 %v31, %v31
  %v35 = vsub.f32 %v33, %v34
  %v36 = vld [vmem:[%s3] sm:$0x1]
  %v37 = vadd.f32 %v35, 1e-05
  %v38 = vrsqrt.pop %v37
  %v39 = vmul.f32 %v36, %v38
  %v40 = vld [vmem:[%s4] sm:$0x1]
  %v41 = vmul.f32 %v31, %v39
  %v42 = vsub.f32 %v40, %v41
  %v43 = vld [vmem:[%s5] sm:$0xf]
  %v44 = vld [vmem:[%s5 + $0x4] sm:$0xf]
  %v45 = vld [vmem:[%s5 + $0x8] sm:$0xf]
  %v46 = vld [vmem:[%s5 + $0xc] sm:$0xf]
  %v47 = vld [vmem:[%s5 + $0x10] sm:$0xf]
  %v48 = vld [vmem:[%s5 + $0x14] sm:$0xf]
  %v49 = vld [vmem:[%s5 + $0x18] sm:$0xf]
  %v50 = vld [vmem:[%s5 + $0x1c] sm:$0xf]
  %v51 = vld [vmem:[%s5 + $0x20] sm:$0xf]
  %v52 = vld [vmem:[%s5 + $0x24] sm:$0xf]
  %v53 = vld [vmem:[%s5 + $0x28] sm:$0xf]
  %v54 = vld [vmem:[%s5 + $0x2c] sm:$0xf]
  %v55 = vld [vmem:[%s5 + $0x30] sm:$0xf]
  %v56 = vld [vmem:[%s5 + $0x34] sm:$0xf]
  %v57 = vld [vmem:[%s5 + $0x38] sm:$0xf]
  %v58 = vld [vmem:[%s5 + $0x3c] sm:$0xf]
  %v59 = vld [vmem:[%s5 + $0x40] sm:$0xf]
  %v60 = vld [vmem:[%s5 + $0x44] sm:$0xf]
  %v61 = vld [vmem:[%s5 + $0x48] sm:$0xf]
  %v62 = vld [vmem:[%s5 + $0x4c] sm:$0xf]
  %v63 = vld [vmem:[%s5 + $0x50] sm:$0xf]
  %v64 = vld [vmem:[%s5 + $0x54] sm:$0xf]
  %v65 = vld [vmem:[%s5 + $0x58] sm:$0xf]
  %v66 = vld [vmem:[%s5 + $0x5c] sm:$0xf]
  %v67 = vld [vmem:[%s5 + $0x60] sm:$0xf]
  %v68 = vld [vmem:[%s5 + $0x64] sm:$0xf]
  %v69 = vld [vmem:[%s5 + $0x68] sm:$0xf]
  %v70 = vld [vmem:[%s5 + $0x6c] sm:$0xf]
  %v71 = vld [vmem:[%s5 + $0x70] sm:$0xf]
  %v72 = vld [vmem:[%s5 + $0x74] sm:$0xf]
  %v73 = vld [vmem:[%s5 + $0x78] sm:$0xf]
  %v74 = vld [vmem:[%s5 + $0x7c] sm:$0xf]
  %v75 = vld [vmem:[%s5 + $0x80] sm:$0xf]
  %v76 = vld [vmem:[%s5 + $0x84] sm:$0xf]
  %v77 = vld [vmem:[%s5 + $0x88] sm:$0xf]
  %v78 = vld [vmem:[%s5 + $0x8c] sm:$0xf]
  %v79 = vld [vmem:[%s5 + $0x90] sm:$0xf]
  %v80 = vld [vmem:[%s5 + $0x94] sm:$0xf]
  %v81 = vld [vmem:[%s5 + $0x98] sm:$0xf]
  %v82 = vld [vmem:[%s5 + $0x9c] sm:$0xf]
  %v83 = vld [vmem:[%s5 + $0xa0] sm:$0xf]
  %v84 = vld [vmem:[%s5 + $0xa4] sm:$0xf]
  %v85 = vld [vmem:[%s5 + $0xa8] sm:$0xf]
  %v86 = vld [vmem:[%s5 + $0xac] sm:$0xf]
  %v87 = vld [vmem:[%s5 + $0xb0] sm:$0xf]
  %v88 = vld [vmem:[%s5 + $0xb4] sm:$0xf]
  %v89 = vld [vmem:[%s5 + $0xb8] sm:$0xf]
  %v90 = vld [vmem:[%s5 + $0xbc] sm:$0xf]
  %v91 = vld [vmem:[%s5 + $0xc0] sm:$0xf]
  %v92 = vld [vmem:[%s5 + $0xc4] sm:$0xf]
  %v93 = vld [vmem:[%s5 + $0xc8] sm:$0xf]
  %v94 = vld [vmem:[%s5 + $0xcc] sm:$0xf]
  %v95 = vld [vmem:[%s5 + $0xd0] sm:$0xf]
  %v96 = vld [vmem:[%s5 + $0xd4] sm:$0xf]
  %v97 = vld [vmem:[%s5 + $0xd8] sm:$0xf]
  %v98 = vld [vmem:[%s5 + $0xdc] sm:$0xf]
  %v99 = vld [vmem:[%s5 + $0xe0] sm:$0xf]
  %v100 = vld [vmem:[%s5 + $0xe4] sm:$0xf]
  %v101 = vld [vmem:[%s5 + $0xe8] sm:$0xf]
  %v102 = vld [vmem:[%s5 + $0xec] sm:$0xf]
  %v103 = vld [vmem:[%s5 + $0xf0] sm:$0xf]
  %v104 = vld [vmem:[%s5 + $0xf4] sm:$0xf]
  %v105 = vld [vmem:[%s5 + $0xf8] sm:$0xf]
  %v106 = vld [vmem:[%s5 + $0xfc] sm:$0xf]
  %v107 = vld [vmem:[%s6] sm:$0xf]
  %v108 = vld [vmem:[%s6 + $0x4] sm:$0xf]
  %v109 = vld [vmem:[%s6 + $0x8] sm:$0xf]
  %v110 = vld [vmem:[%s6 + $0xc] sm:$0xf]
  %v111 = vld [vmem:[%s6 + $0x10] sm:$0xf]
  %v112 = vld [vmem:[%s6 + $0x14] sm:$0xf]
  %v113 = vld [vmem:[%s6 + $0x18] sm:$0xf]
  %v114 = vld [vmem:[%s6 + $0x1c] sm:$0xf]
  %v115 = vld [vmem:[%s6 + $0x20] sm:$0xf]
  %v116 = vld [vmem:[%s6 + $0x24] sm:$0xf]
  %v117 = vld [vmem:[%s6 + $0x28] sm:$0xf]
  %v118 = vld [vmem:[%s6 + $0x2c] sm:$0xf]
  %v119 = vld [vmem:[%s6 + $0x30] sm:$0xf]
  %v120 = vld [vmem:[%s6 + $0x34] sm:$0xf]
  %v121 = vld [vmem:[%s6 + $0x38] sm:$0xf]
  %v122 = vld [vmem:[%s6 + $0x3c] sm:$0xf]
  %v123 = vld [vmem:[%s7] sm:$0x1]
  %v125 = vlaneseq
  %v126 = vshrl.u32 %v125, 7
  %v127 = vsub.s32 0, %v126
  %v128 = vrot.slane %v123, %v127
  %v194 = vunpack.c.l.b16 %v43
  %v195 = vunpack.c.l.b16 %v44
  %v196 = vunpack.c.l.b16 %v45
  %v197 = vunpack.c.l.b16 %v46
  %v198 = vunpack.c.l.b16 %v47
  %v199 = vunpack.c.l.b16 %v48
  %v200 = vunpack.c.l.b16 %v49
  %v201 = vunpack.c.l.b16 %v50
  %v202 = vunpack.c.l.b16 %v51
  %v203 = vunpack.c.l.b16 %v52
  %v204 = vunpack.c.l.b16 %v53
  %v205 = vunpack.c.l.b16 %v54
  %v206 = vunpack.c.l.b16 %v55
  %v207 = vunpack.c.l.b16 %v56
  %v208 = vunpack.c.l.b16 %v57
  %v209 = vunpack.c.l.b16 %v58
  %v210 = vunpack.c.l.b16 %v59
  %v211 = vunpack.c.l.b16 %v60
  %v212 = vunpack.c.l.b16 %v61
  %v213 = vunpack.c.l.b16 %v62
  %v214 = vunpack.c.l.b16 %v63
  %v215 = vunpack.c.l.b16 %v64
  %v216 = vunpack.c.l.b16 %v65
  %v217 = vunpack.c.l.b16 %v66
  %v218 = vunpack.c.l.b16 %v67
  %v219 = vunpack.c.l.b16 %v68
  %v220 = vunpack.c.l.b16 %v69
  %v221 = vunpack.c.l.b16 %v70
  %v222 = vunpack.c.l.b16 %v71
  %v223 = vunpack.c.l.b16 %v72
  %v224 = vunpack.c.l.b16 %v73
  %v225 = vunpack.c.l.b16 %v74
  %v226 = vunpack.c.l.b16 %v75
  %v227 = vunpack.c.l.b16 %v76
  %v228 = vunpack.c.l.b16 %v77
  %v229 = vunpack.c.l.b16 %v78
  %v230 = vunpack.c.l.b16 %v79
  %v231 = vunpack.c.l.b16 %v80
  %v232 = vunpack.c.l.b16 %v81
  %v233 = vunpack.c.l.b16 %v82
  %v234 = vunpack.c.l.b16 %v83
  %v235 = vunpack.c.l.b16 %v84
  %v236 = vunpack.c.l.b16 %v85
  %v237 = vunpack.c.l.b16 %v86
  %v238 = vunpack.c.l.b16 %v87
  %v239 = vunpack.c.l.b16 %v88
  %v240 = vunpack.c.l.b16 %v89
  %v241 = vunpack.c.l.b16 %v90
  %v242 = vunpack.c.l.b16 %v91
  %v243 = vunpack.c.l.b16 %v92
  %v244 = vunpack.c.l.b16 %v93
  %v245 = vunpack.c.l.b16 %v94
  %v246 = vunpack.c.l.b16 %v95
  %v247 = vunpack.c.l.b16 %v96
  %v248 = vunpack.c.l.b16 %v97
  %v249 = vunpack.c.l.b16 %v98
  %v250 = vunpack.c.l.b16 %v99
  %v251 = vunpack.c.l.b16 %v100
  %v252 = vunpack.c.l.b16 %v101
  %v253 = vunpack.c.l.b16 %v102
  %v254 = vunpack.c.l.b16 %v103
  %v255 = vunpack.c.l.b16 %v104
  %v256 = vunpack.c.l.b16 %v105
  %v257 = vunpack.c.l.b16 %v106
  %v258 = vpack.c.b16 %v195, %v194
  %v259 = vpack.c.b16 %v197, %v196
  %v260 = vpack.c.b16 %v199, %v198
  %v261 = vpack.c.b16 %v201, %v200
  %v262 = vpack.c.b16 %v203, %v202
  %v263 = vpack.c.b16 %v205, %v204
  %v264 = vpack.c.b16 %v207, %v206
  %v265 = vpack.c.b16 %v209, %v208
  %v266 = vpack.c.b16 %v211, %v210
  %v267 = vpack.c.b16 %v213, %v212
  %v268 = vpack.c.b16 %v215, %v214
  %v269 = vpack.c.b16 %v217, %v216
  %v270 = vpack.c.b16 %v219, %v218
  %v271 = vpack.c.b16 %v221, %v220
  %v272 = vpack.c.b16 %v223, %v222
  %v273 = vpack.c.b16 %v225, %v224
  %v274 = vpack.c.b16 %v227, %v226
  %v275 = vpack.c.b16 %v229, %v228
  %v276 = vpack.c.b16 %v231, %v230
  %v277 = vpack.c.b16 %v233, %v232
  %v278 = vpack.c.b16 %v235, %v234
  %v279 = vpack.c.b16 %v237, %v236
  %v280 = vpack.c.b16 %v239, %v238
  %v281 = vpack.c.b16 %v241, %v240
  %v282 = vpack.c.b16 %v243, %v242
  %v283 = vpack.c.b16 %v245, %v244
  %v284 = vpack.c.b16 %v247, %v246
  %v285 = vpack.c.b16 %v249, %v248
  %v286 = vpack.c.b16 %v251, %v250
  %v287 = vpack.c.b16 %v253, %v252
  %v288 = vpack.c.b16 %v255, %v254
  %v289 = vpack.c.b16 %v257, %v256
  %v338 = vunpack.c.l.b16 %v107
  %v339 = vunpack.c.l.b16 %v108
  %v340 = vunpack.c.l.b16 %v109
  %v341 = vunpack.c.l.b16 %v110
  %v342 = vunpack.c.l.b16 %v111
  %v343 = vunpack.c.l.b16 %v112
  %v344 = vunpack.c.l.b16 %v113
  %v345 = vunpack.c.l.b16 %v114
  %v346 = vunpack.c.l.b16 %v115
  %v347 = vunpack.c.l.b16 %v116
  %v348 = vunpack.c.l.b16 %v117
  %v349 = vunpack.c.l.b16 %v118
  %v350 = vunpack.c.l.b16 %v119
  %v351 = vunpack.c.l.b16 %v120
  %v352 = vunpack.c.l.b16 %v121
  %v353 = vunpack.c.l.b16 %v122
  %v354 = vpack.c.b16 %v339, %v338
  %v355 = vpack.c.b16 %v341, %v340
  %v356 = vpack.c.b16 %v343, %v342
  %v357 = vpack.c.b16 %v345, %v344
  %v358 = vpack.c.b16 %v347, %v346
  %v359 = vpack.c.b16 %v349, %v348
  %v360 = vpack.c.b16 %v351, %v350
  %v361 = vpack.c.b16 %v353, %v352
  %370 = vmatprep.subr.bf16.mxu0 0
  %371 = vmatpush1.bf16.msra.mxu0 %v361
  %372 = vmatprep.subr.bf16.mxu0 0
  %373 = vmatpush1.bf16.msra.mxu0 %v360
  %374 = vmatprep.subr.bf16.mxu0 0
  %375 = vmatpush1.bf16.msra.mxu0 %v359
  %376 = vmatprep.subr.bf16.mxu0 0
  %377 = vmatpush1.bf16.msra.mxu0 %v358
  %378 = vmatprep.subr.bf16.mxu0 0
  %379 = vmatpush1.bf16.msra.mxu0 %v357
  %380 = vmatprep.subr.bf16.mxu0 0
  %381 = vmatpush1.bf16.msra.mxu0 %v356
  %382 = vmatprep.subr.bf16.mxu0 0
  %383 = vmatpush1.bf16.msra.mxu0 %v355
  %384 = vmatprep.subr.bf16.mxu0 0
  %385 = vmatpush1.bf16.msra.mxu0 %v354
  %386 = vmatprep.subr.bf16.mxu0 0
  %387 = vmatpush2.bf16.msra.mxu0 0
  %388 = vmatprep.subr.bf16.mxu0 0
  %389 = vmatpush2.bf16.msra.mxu0 0
  %390 = vmatprep.subr.bf16.mxu0 0
  %391 = vmatpush2.bf16.msra.mxu0 0
  %392 = vmatprep.subr.bf16.mxu0 0
  %393 = vmatpush2.bf16.msra.mxu0 0
  %394 = vmatprep.subr.bf16.mxu0 0
  %395 = vmatpush2.bf16.msra.mxu0 0
  %396 = vmatprep.subr.bf16.mxu0 0
  %397 = vmatpush2.bf16.msra.mxu0 0
  %398 = vmatprep.subr.bf16.mxu0 0
  %399 = vmatpush2.bf16.msra.mxu0 0
  %400 = vmatprep.subr.bf16.mxu0 0
  %401 = vmatpush2.bf16.msra.mxu0 0
  %402 = vmatprep.mubr.bf16.mxu0 0
  %403 = vmatmul.mubr.bf16.gmra.mxu0 %v258
  %v404 = vpop.f32.mrf.mxu0
  %v405 = vadd.f32 %v128, %v404
  %v406 = vpop.f32.mrf.mxu0
  %v407 = vpop.f32.mrf.mxu0
  %v408 = vadd.f32 %v128, %v407
  %v409 = vpop.f32.mrf.mxu0
  %410 = vmatprep.mubr.bf16.mxu0 0
  %411 = vmatmul.mubr.bf16.gmra.mxu0 %v259
  %v412 = vpop.f32.mrf.mxu0
  %v413 = vadd.f32 %v128, %v412
  %v414 = vpop.f32.mrf.mxu0
  %v415 = vpop.f32.mrf.mxu0
  %v416 = vadd.f32 %v128, %v415
  %v417 = vpop.f32.mrf.mxu0
  %418 = vmatprep.mubr.bf16.mxu0 0
  %419 = vmatmul.mubr.bf16.gmra.mxu0 %v260
  %v420 = vpop.f32.mrf.mxu0
  %v421 = vadd.f32 %v128, %v420
  %v422 = vpop.f32.mrf.mxu0
  %v423 = vpop.f32.mrf.mxu0
  %v424 = vadd.f32 %v128, %v423
  %v425 = vpop.f32.mrf.mxu0
  %426 = vmatprep.mubr.bf16.mxu0 0
  %427 = vmatmul.mubr.bf16.gmra.mxu0 %v261
  %v428 = vpop.f32.mrf.mxu0
  %v429 = vadd.f32 %v128, %v428
  %v430 = vpop.f32.mrf.mxu0
  %v431 = vpop.f32.mrf.mxu0
  %v432 = vadd.f32 %v128, %v431
  %v433 = vpop.f32.mrf.mxu0
  %434 = vmatprep.mubr.bf16.mxu0 0
  %435 = vmatmul.mubr.bf16.gmra.mxu0 %v262
  %v436 = vpop.f32.mrf.mxu0
  %v437 = vadd.f32 %v128, %v436
  %v438 = vpop.f32.mrf.mxu0
  %v439 = vpop.f32.mrf.mxu0
  %v440 = vadd.f32 %v128, %v439
  %v441 = vpop.f32.mrf.mxu0
  %442 = vmatprep.mubr.bf16.mxu0 0
  %443 = vmatmul.mubr.bf16.gmra.mxu0 %v263
  %v444 = vpop.f32.mrf.mxu0
  %v445 = vadd.f32 %v128, %v444
  %v446 = vpop.f32.mrf.mxu0
  %v447 = vpop.f32.mrf.mxu0
  %v448 = vadd.f32 %v128, %v447
  %v449 = vpop.f32.mrf.mxu0
  %450 = vmatprep.mubr.bf16.mxu0 0
  %451 = vmatmul.mubr.bf16.gmra.mxu0 %v264
  %v452 = vpop.f32.mrf.mxu0
  %v453 = vadd.f32 %v128, %v452
  %v454 = vpop.f32.mrf.mxu0
  %v455 = vpop.f32.mrf.mxu0
  %v456 = vadd.f32 %v128, %v455
  %v457 = vpop.f32.mrf.mxu0
  %458 = vmatprep.mubr.bf16.mxu0 0
  %459 = vmatmul.mubr.bf16.gmra.mxu0 %v265
  %v460 = vpop.f32.mrf.mxu0
  %v461 = vadd.f32 %v128, %v460
  %v462 = vpop.f32.mrf.mxu0
  %v463 = vpop.f32.mrf.mxu0
  %v464 = vadd.f32 %v128, %v463
  %v465 = vpop.f32.mrf.mxu0
  %466 = vmatprep.mubr.bf16.mxu0 0
  %467 = vmatmul.mubr.bf16.gmra.mxu0 %v266
  %v468 = vpop.f32.mrf.mxu0
  %v469 = vadd.f32 %v128, %v468
  %v470 = vpop.f32.mrf.mxu0
  %v471 = vpop.f32.mrf.mxu0
  %v472 = vadd.f32 %v128, %v471
  %v473 = vpop.f32.mrf.mxu0
  %474 = vmatprep.mubr.bf16.mxu0 0
  %475 = vmatmul.mubr.bf16.gmra.mxu0 %v267
  %v476 = vpop.f32.mrf.mxu0
  %v477 = vadd.f32 %v128, %v476
  %v478 = vpop.f32.mrf.mxu0
  %v479 = vpop.f32.mrf.mxu0
  %v480 = vadd.f32 %v128, %v479
  %v481 = vpop.f32.mrf.mxu0
  %482 = vmatprep.mubr.bf16.mxu0 0
  %483 = vmatmul.mubr.bf16.gmra.mxu0 %v268
  %v484 = vpop.f32.mrf.mxu0
  %v485 = vadd.f32 %v128, %v484
  %v486 = vpop.f32.mrf.mxu0
  %v487 = vpop.f32.mrf.mxu0
  %v488 = vadd.f32 %v128, %v487
  %v489 = vpop.f32.mrf.mxu0
  %490 = vmatprep.mubr.bf16.mxu0 0
  %491 = vmatmul.mubr.bf16.gmra.mxu0 %v269
  %v492 = vpop.f32.mrf.mxu0
  %v493 = vadd.f32 %v128, %v492
  %v494 = vpop.f32.mrf.mxu0
  %v495 = vpop.f32.mrf.mxu0
  %v496 = vadd.f32 %v128, %v495
  %v497 = vpop.f32.mrf.mxu0
  %498 = vmatprep.mubr.bf16.mxu0 0
  %499 = vmatmul.mubr.bf16.gmra.mxu0 %v270
  %v500 = vpop.f32.mrf.mxu0
  %v501 = vadd.f32 %v128, %v500
  %v502 = vpop.f32.mrf.mxu0
  %v503 = vpop.f32.mrf.mxu0
  %v504 = vadd.f32 %v128, %v503
  %v505 = vpop.f32.mrf.mxu0
  %506 = vmatprep.mubr.bf16.mxu0 0
  %507 = vmatmul.mubr.bf16.gmra.mxu0 %v271
  %v508 = vpop.f32.mrf.mxu0
  %v509 = vadd.f32 %v128, %v508
  %v510 = vpop.f32.mrf.mxu0
  %v511 = vpop.f32.mrf.mxu0
  %v512 = vadd.f32 %v128, %v511
  %v513 = vpop.f32.mrf.mxu0
  %514 = vmatprep.mubr.bf16.mxu0 0
  %515 = vmatmul.mubr.bf16.gmra.mxu0 %v272
  %v516 = vpop.f32.mrf.mxu0
  %v517 = vadd.f32 %v128, %v516
  %v518 = vpop.f32.mrf.mxu0
  %v519 = vpop.f32.mrf.mxu0
  %v520 = vadd.f32 %v128, %v519
  %v521 = vpop.f32.mrf.mxu0
  %522 = vmatprep.mubr.bf16.mxu0 0
  %523 = vmatmul.mubr.bf16.gmra.mxu0 %v273
  %v524 = vpop.f32.mrf.mxu0
  %v525 = vadd.f32 %v128, %v524
  %v526 = vpop.f32.mrf.mxu0
  %v527 = vpop.f32.mrf.mxu0
  %v528 = vadd.f32 %v128, %v527
  %v529 = vpop.f32.mrf.mxu0
  %530 = vmatprep.mubr.bf16.mxu0 0
  %531 = vmatmul.mubr.bf16.gmra.mxu0 %v274
  %v532 = vpop.f32.mrf.mxu0
  %v533 = vadd.f32 %v128, %v532
  %v534 = vpop.f32.mrf.mxu0
  %v535 = vpop.f32.mrf.mxu0
  %v536 = vadd.f32 %v128, %v535
  %v537 = vpop.f32.mrf.mxu0
  %538 = vmatprep.mubr.bf16.mxu0 0
  %539 = vmatmul.mubr.bf16.gmra.mxu0 %v275
  %v540 = vpop.f32.mrf.mxu0
  %v541 = vadd.f32 %v128, %v540
  %v542 = vpop.f32.mrf.mxu0
  %v543 = vpop.f32.mrf.mxu0
  %v544 = vadd.f32 %v128, %v543
  %v545 = vpop.f32.mrf.mxu0
  %546 = vmatprep.mubr.bf16.mxu0 0
  %547 = vmatmul.mubr.bf16.gmra.mxu0 %v276
  %v548 = vpop.f32.mrf.mxu0
  %v549 = vadd.f32 %v128, %v548
  %v550 = vpop.f32.mrf.mxu0
  %v551 = vpop.f32.mrf.mxu0
  %v552 = vadd.f32 %v128, %v551
  %v553 = vpop.f32.mrf.mxu0
  %554 = vmatprep.mubr.bf16.mxu0 0
  %555 = vmatmul.mubr.bf16.gmra.mxu0 %v277
  %v556 = vpop.f32.mrf.mxu0
  %v557 = vadd.f32 %v128, %v556
  %v558 = vpop.f32.mrf.mxu0
  %v559 = vpop.f32.mrf.mxu0
  %v560 = vadd.f32 %v128, %v559
  %v561 = vpop.f32.mrf.mxu0
  %562 = vmatprep.mubr.bf16.mxu0 0
  %563 = vmatmul.mubr.bf16.gmra.mxu0 %v278
  %v564 = vpop.f32.mrf.mxu0
  %v565 = vadd.f32 %v128, %v564
  %v566 = vpop.f32.mrf.mxu0
  %v567 = vpop.f32.mrf.mxu0
  %v568 = vadd.f32 %v128, %v567
  %v569 = vpop.f32.mrf.mxu0
  %570 = vmatprep.mubr.bf16.mxu0 0
  %571 = vmatmul.mubr.bf16.gmra.mxu0 %v279
  %v572 = vpop.f32.mrf.mxu0
  %v573 = vadd.f32 %v128, %v572
  %v574 = vpop.f32.mrf.mxu0
  %v575 = vpop.f32.mrf.mxu0
  %v576 = vadd.f32 %v128, %v575
  %v577 = vpop.f32.mrf.mxu0
  %578 = vmatprep.mubr.bf16.mxu0 0
  %579 = vmatmul.mubr.bf16.gmra.mxu0 %v280
  %v580 = vpop.f32.mrf.mxu0
  %v581 = vadd.f32 %v128, %v580
  %v582 = vpop.f32.mrf.mxu0
  %v583 = vpop.f32.mrf.mxu0
  %v584 = vadd.f32 %v128, %v583
  %v585 = vpop.f32.mrf.mxu0
  %586 = vmatprep.mubr.bf16.mxu0 0
  %587 = vmatmul.mubr.bf16.gmra.mxu0 %v281
  %v588 = vpop.f32.mrf.mxu0
  %v589 = vadd.f32 %v128, %v588
  %v590 = vpop.f32.mrf.mxu0
  %v591 = vpop.f32.mrf.mxu0
  %v592 = vadd.f32 %v128, %v591
  %v593 = vpop.f32.mrf.mxu0
  %594 = vmatprep.mubr.bf16.mxu0 0
  %595 = vmatmul.mubr.bf16.gmra.mxu0 %v282
  %v596 = vpop.f32.mrf.mxu0
  %v597 = vadd.f32 %v128, %v596
  %v598 = vpop.f32.mrf.mxu0
  %v599 = vpop.f32.mrf.mxu0
  %v600 = vadd.f32 %v128, %v599
  %v601 = vpop.f32.mrf.mxu0
  %602 = vmatprep.mubr.bf16.mxu0 0
  %603 = vmatmul.mubr.bf16.gmra.mxu0 %v283
  %v604 = vpop.f32.mrf.mxu0
  %v605 = vadd.f32 %v128, %v604
  %v606 = vpop.f32.mrf.mxu0
  %v607 = vpop.f32.mrf.mxu0
  %v608 = vadd.f32 %v128, %v607
  %v609 = vpop.f32.mrf.mxu0
  %610 = vmatprep.mubr.bf16.mxu0 0
  %611 = vmatmul.mubr.bf16.gmra.mxu0 %v284
  %v612 = vpop.f32.mrf.mxu0
  %v613 = vadd.f32 %v128, %v612
  %v614 = vpop.f32.mrf.mxu0
  %v615 = vpop.f32.mrf.mxu0
  %v616 = vadd.f32 %v128, %v615
  %v617 = vpop.f32.mrf.mxu0
  %618 = vmatprep.mubr.bf16.mxu0 0
  %619 = vmatmul.mubr.bf16.gmra.mxu0 %v285
  %v620 = vpop.f32.mrf.mxu0
  %v621 = vadd.f32 %v128, %v620
  %v622 = vpop.f32.mrf.mxu0
  %v623 = vpop.f32.mrf.mxu0
  %v624 = vadd.f32 %v128, %v623
  %v625 = vpop.f32.mrf.mxu0
  %626 = vmatprep.mubr.bf16.mxu0 0
  %627 = vmatmul.mubr.bf16.gmra.mxu0 %v286
  %v628 = vpop.f32.mrf.mxu0
  %v629 = vadd.f32 %v128, %v628
  %v630 = vpop.f32.mrf.mxu0
  %v631 = vpop.f32.mrf.mxu0
  %v632 = vadd.f32 %v128, %v631
  %v633 = vpop.f32.mrf.mxu0
  %634 = vmatprep.mubr.bf16.mxu0 0
  %635 = vmatmul.mubr.bf16.gmra.mxu0 %v287
  %v636 = vpop.f32.mrf.mxu0
  %v637 = vadd.f32 %v128, %v636
  %v638 = vpop.f32.mrf.mxu0
  %v639 = vpop.f32.mrf.mxu0
  %v640 = vadd.f32 %v128, %v639
  %v641 = vpop.f32.mrf.mxu0
  %642 = vmatprep.mubr.bf16.mxu0 0
  %643 = vmatmul.mubr.bf16.gmra.mxu0 %v288
  %v644 = vpop.f32.mrf.mxu0
  %v645 = vadd.f32 %v128, %v644
  %v646 = vpop.f32.mrf.mxu0
  %v647 = vpop.f32.mrf.mxu0
  %v648 = vadd.f32 %v128, %v647
  %v649 = vpop.f32.mrf.mxu0
  %650 = vmatprep.mubr.bf16.mxu0 0
  %651 = vmatmul.mubr.bf16.gmra.mxu0 %v289
  %v652 = vpop.f32.mrf.mxu0
  %v653 = vadd.f32 %v128, %v652
  %v654 = vpop.f32.mrf.mxu0
  %v655 = vpop.f32.mrf.mxu0
  %v656 = vadd.f32 %v128, %v655
  %v657 = vpop.f32.mrf.mxu0
  %658 = vdwg.mxu0
  %v659 = vld [vmem:[%s0] sm:$0xff]
  %v660 = vld [vmem:[%s0 + $0x8] sm:$0xff]
  %v661 = vld [vmem:[%s0 + $0x10] sm:$0xff]
  %v662 = vld [vmem:[%s0 + $0x18] sm:$0xff]
  %v663 = vld [vmem:[%s0 + $0x20] sm:$0xff]
  %v664 = vld [vmem:[%s0 + $0x28] sm:$0xff]
  %v665 = vld [vmem:[%s0 + $0x30] sm:$0xff]
  %v666 = vld [vmem:[%s0 + $0x38] sm:$0xff]
  %v667 = vld [vmem:[%s0 + $0x40] sm:$0xff]
  %v668 = vld [vmem:[%s0 + $0x48] sm:$0xff]
  %v669 = vld [vmem:[%s0 + $0x50] sm:$0xff]
  %v670 = vld [vmem:[%s0 + $0x58] sm:$0xff]
  %v671 = vld [vmem:[%s0 + $0x60] sm:$0xff]
  %v672 = vld [vmem:[%s0 + $0x68] sm:$0xff]
  %v673 = vld [vmem:[%s0 + $0x70] sm:$0xff]
  %v674 = vld [vmem:[%s0 + $0x78] sm:$0xff]
  %v675 = vld [vmem:[%s0 + $0x80] sm:$0xff]
  %v676 = vld [vmem:[%s0 + $0x88] sm:$0xff]
  %v677 = vld [vmem:[%s0 + $0x90] sm:$0xff]
  %v678 = vld [vmem:[%s0 + $0x98] sm:$0xff]
  %v679 = vld [vmem:[%s0 + $0xa0] sm:$0xff]
  %v680 = vld [vmem:[%s0 + $0xa8] sm:$0xff]
  %v681 = vld [vmem:[%s0 + $0xb0] sm:$0xff]
  %v682 = vld [vmem:[%s0 + $0xb8] sm:$0xff]
  %v683 = vld [vmem:[%s0 + $0xc0] sm:$0xff]
  %v684 = vld [vmem:[%s0 + $0xc8] sm:$0xff]
  %v685 = vld [vmem:[%s0 + $0xd0] sm:$0xff]
  %v686 = vld [vmem:[%s0 + $0xd8] sm:$0xff]
  %v687 = vld [vmem:[%s0 + $0xe0] sm:$0xff]
  %v688 = vld [vmem:[%s0 + $0xe8] sm:$0xff]
  %v689 = vld [vmem:[%s0 + $0xf0] sm:$0xff]
  %v690 = vld [vmem:[%s0 + $0xf8] sm:$0xff]
  %v691 = vld [vmem:[%s0 + $0x100] sm:$0xff]
  %v692 = vld [vmem:[%s0 + $0x108] sm:$0xff]
  %v693 = vld [vmem:[%s0 + $0x110] sm:$0xff]
  %v694 = vld [vmem:[%s0 + $0x118] sm:$0xff]
  %v695 = vld [vmem:[%s0 + $0x120] sm:$0xff]
  %v696 = vld [vmem:[%s0 + $0x128] sm:$0xff]
  %v697 = vld [vmem:[%s0 + $0x130] sm:$0xff]
  %v698 = vld [vmem:[%s0 + $0x138] sm:$0xff]
  %v699 = vld [vmem:[%s0 + $0x140] sm:$0xff]
  %v700 = vld [vmem:[%s0 + $0x148] sm:$0xff]
  %v701 = vld [vmem:[%s0 + $0x150] sm:$0xff]
  %v702 = vld [vmem:[%s0 + $0x158] sm:$0xff]
  %v703 = vld [vmem:[%s0 + $0x160] sm:$0xff]
  %v704 = vld [vmem:[%s0 + $0x168] sm:$0xff]
  %v705 = vld [vmem:[%s0 + $0x170] sm:$0xff]
  %v706 = vld [vmem:[%s0 + $0x178] sm:$0xff]
  %v707 = vld [vmem:[%s0 + $0x180] sm:$0xff]
  %v708 = vld [vmem:[%s0 + $0x188] sm:$0xff]
  %v709 = vld [vmem:[%s0 + $0x190] sm:$0xff]
  %v710 = vld [vmem:[%s0 + $0x198] sm:$0xff]
  %v711 = vld [vmem:[%s0 + $0x1a0] sm:$0xff]
  %v712 = vld [vmem:[%s0 + $0x1a8] sm:$0xff]
  %v713 = vld [vmem:[%s0 + $0x1b0] sm:$0xff]
  %v714 = vld [vmem:[%s0 + $0x1b8] sm:$0xff]
  %v715 = vld [vmem:[%s0 + $0x1c0] sm:$0xff]
  %v716 = vld [vmem:[%s0 + $0x1c8] sm:$0xff]
  %v717 = vld [vmem:[%s0 + $0x1d0] sm:$0xff]
  %v718 = vld [vmem:[%s0 + $0x1d8] sm:$0xff]
  %v719 = vld [vmem:[%s0 + $0x1e0] sm:$0xff]
  %v720 = vld [vmem:[%s0 + $0x1e8] sm:$0xff]
  %v721 = vld [vmem:[%s0 + $0x1f0] sm:$0xff]
  %v722 = vld [vmem:[%s0 + $0x1f8] sm:$0xff]
  %v724 = vlaneseq
  %v725 = vshrl.u32 %v724, 7
  %v726 = vsub.s32 0, %v725
  %v727 = vrot.slane %v39, %v726
  %v729 = vmul.f32 %v659, %v727
  %v730 = vmul.f32 %v660, %v727
  %v731 = vmul.f32 %v661, %v727
  %v732 = vmul.f32 %v662, %v727
  %v733 = vmul.f32 %v663, %v727
  %v734 = vmul.f32 %v664, %v727
  %v735 = vmul.f32 %v665, %v727
  %v736 = vmul.f32 %v666, %v727
  %v737 = vmul.f32 %v667, %v727
  %v738 = vmul.f32 %v668, %v727
  %v739 = vmul.f32 %v669, %v727
  %v740 = vmul.f32 %v670, %v727
  %v741 = vmul.f32 %v671, %v727
  %v742 = vmul.f32 %v672, %v727
  %v743 = vmul.f32 %v673, %v727
  %v744 = vmul.f32 %v674, %v727
  %v745 = vmul.f32 %v675, %v727
  %v746 = vmul.f32 %v676, %v727
  %v747 = vmul.f32 %v677, %v727
  %v748 = vmul.f32 %v678, %v727
  %v749 = vmul.f32 %v679, %v727
  %v750 = vmul.f32 %v680, %v727
  %v751 = vmul.f32 %v681, %v727
  %v752 = vmul.f32 %v682, %v727
  %v753 = vmul.f32 %v683, %v727
  %v754 = vmul.f32 %v684, %v727
  %v755 = vmul.f32 %v685, %v727
  %v756 = vmul.f32 %v686, %v727
  %v757 = vmul.f32 %v687, %v727
  %v758 = vmul.f32 %v688, %v727
  %v759 = vmul.f32 %v689, %v727
  %v760 = vmul.f32 %v690, %v727
  %v761 = vmul.f32 %v691, %v727
  %v762 = vmul.f32 %v692, %v727
  %v763 = vmul.f32 %v693, %v727
  %v764 = vmul.f32 %v694, %v727
  %v765 = vmul.f32 %v695, %v727
  %v766 = vmul.f32 %v696, %v727
  %v767 = vmul.f32 %v697, %v727
  %v768 = vmul.f32 %v698, %v727
  %v769 = vmul.f32 %v699, %v727
  %v770 = vmul.f32 %v700, %v727
  %v771 = vmul.f32 %v701, %v727
  %v772 = vmul.f32 %v702, %v727
  %v773 = vmul.f32 %v703, %v727
  %v774 = vmul.f32 %v704, %v727
  %v775 = vmul.f32 %v705, %v727
  %v776 = vmul.f32 %v706, %v727
  %v777 = vmul.f32 %v707, %v727
  %v778 = vmul.f32 %v708, %v727
  %v779 = vmul.f32 %v709, %v727
  %v780 = vmul.f32 %v710, %v727
  %v781 = vmul.f32 %v711, %v727
  %v782 = vmul.f32 %v712, %v727
  %v783 = vmul.f32 %v713, %v727
  %v784 = vmul.f32 %v714, %v727
  %v785 = vmul.f32 %v715, %v727
  %v786 = vmul.f32 %v716, %v727
  %v787 = vmul.f32 %v717, %v727
  %v788 = vmul.f32 %v718, %v727
  %v789 = vmul.f32 %v719, %v727
  %v790 = vmul.f32 %v720, %v727
  %v791 = vmul.f32 %v721, %v727
  %v792 = vmul.f32 %v722, %v727
  %v794 = vlaneseq
  %v795 = vshrl.u32 %v794, 7
  %v796 = vsub.s32 0, %v795
  %v797 = vrot.slane %v42, %v796
  %v799 = vadd.f32 %v729, %v797
  %v800 = vadd.f32 %v730, %v797
  %v801 = vadd.f32 %v731, %v797
  %v802 = vadd.f32 %v732, %v797
  %v803 = vadd.f32 %v733, %v797
  %v804 = vadd.f32 %v734, %v797
  %v805 = vadd.f32 %v735, %v797
  %v806 = vadd.f32 %v736, %v797
  %v807 = vadd.f32 %v737, %v797
  %v808 = vadd.f32 %v738, %v797
  %v809 = vadd.f32 %v739, %v797
  %v810 = vadd.f32 %v740, %v797
  %v811 = vadd.f32 %v741, %v797
  %v812 = vadd.f32 %v742, %v797
  %v813 = vadd.f32 %v743, %v797
  %v814 = vadd.f32 %v744, %v797
  %v815 = vadd.f32 %v745, %v797
  %v816 = vadd.f32 %v746, %v797
  %v817 = vadd.f32 %v747, %v797
  %v818 = vadd.f32 %v748, %v797
  %v819 = vadd.f32 %v749, %v797
  %v820 = vadd.f32 %v750, %v797
  %v821 = vadd.f32 %v751, %v797
  %v822 = vadd.f32 %v752, %v797
  %v823 = vadd.f32 %v753, %v797
  %v824 = vadd.f32 %v754, %v797
  %v825 = vadd.f32 %v755, %v797
  %v826 = vadd.f32 %v756, %v797
  %v827 = vadd.f32 %v757, %v797
  %v828 = vadd.f32 %v758, %v797
  %v829 = vadd.f32 %v759, %v797
  %v830 = vadd.f32 %v760, %v797
  %v831 = vadd.f32 %v761, %v797
  %v832 = vadd.f32 %v762, %v797
  %v833 = vadd.f32 %v763, %v797
  %v834 = vadd.f32 %v764, %v797
  %v835 = vadd.f32 %v765, %v797
  %v836 = vadd.f32 %v766, %v797
  %v837 = vadd.f32 %v767, %v797
  %v838 = vadd.f32 %v768, %v797
  %v839 = vadd.f32 %v769, %v797
  %v840 = vadd.f32 %v770, %v797
  %v841 = vadd.f32 %v771, %v797
  %v842 = vadd.f32 %v772, %v797
  %v843 = vadd.f32 %v773, %v797
  %v844 = vadd.f32 %v774, %v797
  %v845 = vadd.f32 %v775, %v797
  %v846 = vadd.f32 %v776, %v797
  %v847 = vadd.f32 %v777, %v797
  %v848 = vadd.f32 %v778, %v797
  %v849 = vadd.f32 %v779, %v797
  %v850 = vadd.f32 %v780, %v797
  %v851 = vadd.f32 %v781, %v797
  %v852 = vadd.f32 %v782, %v797
  %v853 = vadd.f32 %v783, %v797
  %v854 = vadd.f32 %v784, %v797
  %v855 = vadd.f32 %v785, %v797
  %v856 = vadd.f32 %v786, %v797
  %v857 = vadd.f32 %v787, %v797
  %v858 = vadd.f32 %v788, %v797
  %v859 = vadd.f32 %v789, %v797
  %v860 = vadd.f32 %v790, %v797
  %v861 = vadd.f32 %v791, %v797
  %v862 = vadd.f32 %v792, %v797
  %v863 = vadd.f32 %v799, %v405
  %v864 = vadd.f32 %v800, %v408
  %v865 = vadd.f32 %v801, %v413
  %v866 = vadd.f32 %v802, %v416
  %v867 = vadd.f32 %v803, %v421
  %v868 = vadd.f32 %v804, %v424
  %v869 = vadd.f32 %v805, %v429
  %v870 = vadd.f32 %v806, %v432
  %v871 = vadd.f32 %v807, %v437
  %v872 = vadd.f32 %v808, %v440
  %v873 = vadd.f32 %v809, %v445
  %v874 = vadd.f32 %v810, %v448
  %v875 = vadd.f32 %v811, %v453
  %v876 = vadd.f32 %v812, %v456
  %v877 = vadd.f32 %v813, %v461
  %v878 = vadd.f32 %v814, %v464
  %v879 = vadd.f32 %v815, %v469
  %v880 = vadd.f32 %v816, %v472
  %v881 = vadd.f32 %v817, %v477
  %v882 = vadd.f32 %v818, %v480
  %v883 = vadd.f32 %v819, %v485
  %v884 = vadd.f32 %v820, %v488
  %v885 = vadd.f32 %v821, %v493
  %v886 = vadd.f32 %v822, %v496
  %v887 = vadd.f32 %v823, %v501
  %v888 = vadd.f32 %v824, %v504
  %v889 = vadd.f32 %v825, %v509
  %v890 = vadd.f32 %v826, %v512
  %v891 = vadd.f32 %v827, %v517
  %v892 = vadd.f32 %v828, %v520
  %v893 = vadd.f32 %v829, %v525
  %v894 = vadd.f32 %v830, %v528
  %v895 = vadd.f32 %v831, %v533
  %v896 = vadd.f32 %v832, %v536
  %v897 = vadd.f32 %v833, %v541
  %v898 = vadd.f32 %v834, %v544
  %v899 = vadd.f32 %v835, %v549
  %v900 = vadd.f32 %v836, %v552
  %v901 = vadd.f32 %v837, %v557
  %v902 = vadd.f32 %v838, %v560
  %v903 = vadd.f32 %v839, %v565
  %v904 = vadd.f32 %v840, %v568
  %v905 = vadd.f32 %v841, %v573
  %v906 = vadd.f32 %v842, %v576
  %v907 = vadd.f32 %v843, %v581
  %v908 = vadd.f32 %v844, %v584
  %v909 = vadd.f32 %v845, %v589
  %v910 = vadd.f32 %v846, %v592
  %v911 = vadd.f32 %v847, %v597
  %v912 = vadd.f32 %v848, %v600
  %v913 = vadd.f32 %v849, %v605
  %v914 = vadd.f32 %v850, %v608
  %v915 = vadd.f32 %v851, %v613
  %v916 = vadd.f32 %v852, %v616
  %v917 = vadd.f32 %v853, %v621
  %v918 = vadd.f32 %v854, %v624
  %v919 = vadd.f32 %v855, %v629
  %v920 = vadd.f32 %v856, %v632
  %v921 = vadd.f32 %v857, %v637
  %v922 = vadd.f32 %v858, %v640
  %v923 = vadd.f32 %v859, %v645
  %v924 = vadd.f32 %v860, %v648
  %v925 = vadd.f32 %v861, %v653
  %v926 = vadd.f32 %v862, %v656
  %v927 = vmax.f32 %v863, 0.0
  %v928 = vmax.f32 %v864, 0.0
  %v929 = vmax.f32 %v865, 0.0
  %v930 = vmax.f32 %v866, 0.0
  %v931 = vmax.f32 %v867, 0.0
  %v932 = vmax.f32 %v868, 0.0
  %v933 = vmax.f32 %v869, 0.0
  %v934 = vmax.f32 %v870, 0.0
  %v935 = vmax.f32 %v871, 0.0
  %v936 = vmax.f32 %v872, 0.0
  %v937 = vmax.f32 %v873, 0.0
  %v938 = vmax.f32 %v874, 0.0
  %v939 = vmax.f32 %v875, 0.0
  %v940 = vmax.f32 %v876, 0.0
  %v941 = vmax.f32 %v877, 0.0
  %v942 = vmax.f32 %v878, 0.0
  %v943 = vmax.f32 %v879, 0.0
  %v944 = vmax.f32 %v880, 0.0
  %v945 = vmax.f32 %v881, 0.0
  %v946 = vmax.f32 %v882, 0.0
  %v947 = vmax.f32 %v883, 0.0
  %v948 = vmax.f32 %v884, 0.0
  %v949 = vmax.f32 %v885, 0.0
  %v950 = vmax.f32 %v886, 0.0
  %v951 = vmax.f32 %v887, 0.0
  %v952 = vmax.f32 %v888, 0.0
  %v953 = vmax.f32 %v889, 0.0
  %v954 = vmax.f32 %v890, 0.0
  %v955 = vmax.f32 %v891, 0.0
  %v956 = vmax.f32 %v892, 0.0
  %v957 = vmax.f32 %v893, 0.0
  %v958 = vmax.f32 %v894, 0.0
  %v959 = vmax.f32 %v895, 0.0
  %v960 = vmax.f32 %v896, 0.0
  %v961 = vmax.f32 %v897, 0.0
  %v962 = vmax.f32 %v898, 0.0
  %v963 = vmax.f32 %v899, 0.0
  %v964 = vmax.f32 %v900, 0.0
  %v965 = vmax.f32 %v901, 0.0
  %v966 = vmax.f32 %v902, 0.0
  %v967 = vmax.f32 %v903, 0.0
  %v968 = vmax.f32 %v904, 0.0
  %v969 = vmax.f32 %v905, 0.0
  %v970 = vmax.f32 %v906, 0.0
  %v971 = vmax.f32 %v907, 0.0
  %v972 = vmax.f32 %v908, 0.0
  %v973 = vmax.f32 %v909, 0.0
  %v974 = vmax.f32 %v910, 0.0
  %v975 = vmax.f32 %v911, 0.0
  %v976 = vmax.f32 %v912, 0.0
  %v977 = vmax.f32 %v913, 0.0
  %v978 = vmax.f32 %v914, 0.0
  %v979 = vmax.f32 %v915, 0.0
  %v980 = vmax.f32 %v916, 0.0
  %v981 = vmax.f32 %v917, 0.0
  %v982 = vmax.f32 %v918, 0.0
  %v983 = vmax.f32 %v919, 0.0
  %v984 = vmax.f32 %v920, 0.0
  %v985 = vmax.f32 %v921, 0.0
  %v986 = vmax.f32 %v922, 0.0
  %v987 = vmax.f32 %v923, 0.0
  %v988 = vmax.f32 %v924, 0.0
  %v989 = vmax.f32 %v925, 0.0
  %v990 = vmax.f32 %v926, 0.0
  %991 = vst [vmem:[%s8] sm:$0xff] %v927
  %992 = vst [vmem:[%s8 + $0x8] sm:$0xff] %v928
  %993 = vst [vmem:[%s8 + $0x10] sm:$0xff] %v929
  %994 = vst [vmem:[%s8 + $0x18] sm:$0xff] %v930
  %995 = vst [vmem:[%s8 + $0x20] sm:$0xff] %v931
  %996 = vst [vmem:[%s8 + $0x28] sm:$0xff] %v932
  %997 = vst [vmem:[%s8 + $0x30] sm:$0xff] %v933
  %998 = vst [vmem:[%s8 + $0x38] sm:$0xff] %v934
  %999 = vst [vmem:[%s8 + $0x40] sm:$0xff] %v935
  %1000 = vst [vmem:[%s8 + $0x48] sm:$0xff] %v936
  %1001 = vst [vmem:[%s8 + $0x50] sm:$0xff] %v937
  %1002 = vst [vmem:[%s8 + $0x58] sm:$0xff] %v938
  %1003 = vst [vmem:[%s8 + $0x60] sm:$0xff] %v939
  %1004 = vst [vmem:[%s8 + $0x68] sm:$0xff] %v940
  %1005 = vst [vmem:[%s8 + $0x70] sm:$0xff] %v941
  %1006 = vst [vmem:[%s8 + $0x78] sm:$0xff] %v942
  %1007 = vst [vmem:[%s8 + $0x80] sm:$0xff] %v943
  %1008 = vst [vmem:[%s8 + $0x88] sm:$0xff] %v944
  %1009 = vst [vmem:[%s8 + $0x90] sm:$0xff] %v945
  %1010 = vst [vmem:[%s8 + $0x98] sm:$0xff] %v946
  %1011 = vst [vmem:[%s8 + $0xa0] sm:$0xff] %v947
  %1012 = vst [vmem:[%s8 + $0xa8] sm:$0xff] %v948
  %1013 = vst [vmem:[%s8 + $0xb0] sm:$0xff] %v949
  %1014 = vst [vmem:[%s8 + $0xb8] sm:$0xff] %v950
  %1015 = vst [vmem:[%s8 + $0xc0] sm:$0xff] %v951
  %1016 = vst [vmem:[%s8 + $0xc8] sm:$0xff] %v952
  %1017 = vst [vmem:[%s8 + $0xd0] sm:$0xff] %v953
  %1018 = vst [vmem:[%s8 + $0xd8] sm:$0xff] %v954
  %1019 = vst [vmem:[%s8 + $0xe0] sm:$0xff] %v955
  %1020 = vst [vmem:[%s8 + $0xe8] sm:$0xff] %v956
  %1021 = vst [vmem:[%s8 + $0xf0] sm:$0xff] %v957
  %1022 = vst [vmem:[%s8 + $0xf8] sm:$0xff] %v958
  %1023 = vst [vmem:[%s8 + $0x100] sm:$0xff] %v959
  %1024 = vst [vmem:[%s8 + $0x108] sm:$0xff] %v960
  %1025 = vst [vmem:[%s8 + $0x110] sm:$0xff] %v961
  %1026 = vst [vmem:[%s8 + $0x118] sm:$0xff] %v962
  %1027 = vst [vmem:[%s8 + $0x120] sm:$0xff] %v963
  %1028 = vst [vmem:[%s8 + $0x128] sm:$0xff] %v964
  %1029 = vst [vmem:[%s8 + $0x130] sm:$0xff] %v965
  %1030 = vst [vmem:[%s8 + $0x138] sm:$0xff] %v966
  %1031 = vst [vmem:[%s8 + $0x140] sm:$0xff] %v967
  %1032 = vst [vmem:[%s8 + $0x148] sm:$0xff] %v968
  %1033 = vst [vmem:[%s8 + $0x150] sm:$0xff] %v969
  %1034 = vst [vmem:[%s8 + $0x158] sm:$0xff] %v970
  %1035 = vst [vmem:[%s8 + $0x160] sm:$0xff] %v971
  %1036 = vst [vmem:[%s8 + $0x168] sm:$0xff] %v972
  %1037 = vst [vmem:[%s8 + $0x170] sm:$0xff] %v973
  %1038 = vst [vmem:[%s8 + $0x178] sm:$0xff] %v974
  %1039 = vst [vmem:[%s8 + $0x180] sm:$0xff] %v975
  %1040 = vst [vmem:[%s8 + $0x188] sm:$0xff] %v976
  %1041 = vst [vmem:[%s8 + $0x190] sm:$0xff] %v977
  %1042 = vst [vmem:[%s8 + $0x198] sm:$0xff] %v978
  %1043 = vst [vmem:[%s8 + $0x1a0] sm:$0xff] %v979
  %1044 = vst [vmem:[%s8 + $0x1a8] sm:$0xff] %v980
  %1045 = vst [vmem:[%s8 + $0x1b0] sm:$0xff] %v981
  %1046 = vst [vmem:[%s8 + $0x1b8] sm:$0xff] %v982
  %1047 = vst [vmem:[%s8 + $0x1c0] sm:$0xff] %v983
  %1048 = vst [vmem:[%s8 + $0x1c8] sm:$0xff] %v984
  %1049 = vst [vmem:[%s8 + $0x1d0] sm:$0xff] %v985
  %1050 = vst [vmem:[%s8 + $0x1d8] sm:$0xff] %v986
  %1051 = vst [vmem:[%s8 + $0x1e0] sm:$0xff] %v987
  %1052 = vst [vmem:[%s8 + $0x1e8] sm:$0xff] %v988
  %1053 = vst [vmem:[%s8 + $0x1f0] sm:$0xff] %v989
  %1054 = vst [vmem:[%s8 + $0x1f8] sm:$0xff] %v990
  // Predicated region
  $region34: #{basic_block_forward.7} parent=0 // pred_check
    _
  $region35: #{basic_block_forward.7} parent=0 // pred_check_branch
    %1056 = sbr.rel (0) target = $region37
  $region36: #{basic_block_forward.7} parent=0 // pred_region
    _
  $region37: #{basic_block_forward.7} parent=0 // pred_fallthru
    _
  // Predicated region
  $region38: #{basic_block_forward.7} parent=0 // pred_check
    _
  $region39: #{basic_block_forward.7} parent=0 // pred_check_branch
    %1058 = sbr.rel (0) target = $region41
  $region40: #{basic_block_forward.7} parent=0 // pred_region
    _
  $region41: #{basic_block_forward.7} parent=0 // pred_fallthru
    _

</llo_original>
